<compile_context>
chip_gen: v6e
topology: v6e:2x2x1
jax: 0.10.0
libtpu: 0.0.40
codegen_flags: <defaults>
</compile_context>

<pallas_src>
import jax
import jax.numpy as jnp
from jax import lax
from jax.experimental import pallas as pl
from jax.experimental.pallas import tpu as pltpu


def _round_up(x, m):
    return ((x + m - 1) // m) * m


def _vmem_limit_bytes(B, chunk_t, D, Hp, Cp):
    """Explicit VMEM budget: weights + double-buffered x chunk + pre chunk + h."""
    f32 = 4

    def tile(r, c):  # pad last-2 dims to the (8, 128) vreg tile
        return _round_up(max(r, 1), 8) * _round_up(max(c, 1), 128) * f32

    x_blk = B * _round_up(chunk_t, 8) * _round_up(D, 128) * f32
    weights = tile(D, Hp) + tile(Hp, Hp) + tile(1, Hp) + tile(Hp, Cp) + tile(1, Cp)
    pre = B * _round_up(chunk_t, 8) * Hp * f32
    h = tile(B, Hp)
    out_blk = tile(B, Cp)
    total = 2 * (x_blk + weights + out_blk) + pre + h   # in/out double-buffered
    total = 2 * total + (4 << 20)                        # compiler-temp headroom
    return int(min(max(total, 16 << 20), 48 << 20))      # safe on v5e/v6e/v7x


def _make_kernel(B, T_total, chunk_t, unroll):
    divisible = (T_total % chunk_t == 0)

    def kernel(x_ref, wih_ref, whh_ref, brnn_ref, wfc_ref, bfc_ref,
               out_ref, h_ref, pre_ref):
        tc = pl.program_id(0)
        last = pl.num_programs(0) - 1

        @pl.when(tc == 0)
        def _init():
            h_ref[...] = jnp.zeros_like(h_ref)

        # ---- Phase 1 (time-parallel, off the serial chain): input projection
        # + fused RNN bias for every timestep of this chunk, staged into VMEM
        # scratch. One (chunk_t, D) @ (D, Hp) matmul per (small, static) batch
        # row avoids any cross-tile relayout of the batch-major x block.
        wih = wih_ref[...]
        brnn = brnn_ref[...]
        for b in range(B):
            pre_ref[b] = (jnp.dot(x_ref[b], wih,
                                  preferred_element_type=jnp.float32) + brnn)

        # ---- Phase 2 (serial recurrence): only h @ W_hh + pre[t] and tanh on
        # the critical path; W_hh stays resident across the whole chunk.
        whh = whh_ref[...]

        def step(t, h):
            rows = [pre_ref[b, pl.ds(t, 1), :] for b in range(B)]   # (1, Hp) each
            pre_t = rows[0] if B == 1 else jnp.concatenate(rows, axis=0)
            return jnp.tanh(pre_t +
                            jnp.dot(h, whh, preferred_element_type=jnp.float32))

        if divisible:
            # Static trip count: modest unroll keeps LLO visibility while
            # bounding code size / vreg pressure.
            h_ref[...] = lax.fori_loop(0, chunk_t, step, h_ref[...],
                                       unroll=unroll)
        else:
            # Ragged tail chunk: only the valid timesteps update h.
            n_valid = jnp.minimum(chunk_t, T_total - tc * chunk_t)

            @pl.loop(0, n_valid)
            def _steps(t):
                h_ref[...] = step(t, h_ref[...])

        # ---- Epilogue: Linear on the last hidden state; lane-dense (B, Cp)
        # store, only on the final chunk.
        @pl.when(tc == last)
        def _fc():
            h = h_ref[...]
            out_ref[...] = (jnp.dot(h, wfc_ref[...],
                                    preferred_element_type=jnp.float32)
                            + bfc_ref[...]).astype(out_ref.dtype)

    return kernel


def lstm_model_forward(x, w_ih, w_hh, b_ih, b_hh, w_fc, b_fc,
                       *, chunk_t=None, unroll=8):
    """x: (B, T, D) float32. Returns (B, num_classes) float32."""
    B, T, D = x.shape
    H = w_ih.shape[0]
    C = w_fc.shape[0]

    Hp = _round_up(H, 128)   # lane dim of hidden state
    Cp = _round_up(C, 128)   # lane dim of output

    # Time-chunk selection: a chunk must be a multiple of 8 (sublane tile)
    # unless it spans the whole sequence (full-dim block is always legal).
    if chunk_t is None:
        chunk_t = 256
    chunk_t = min(chunk_t, T)
    if chunk_t < T:
        chunk_t = max(8, (chunk_t // 8) * 8)
    n_chunks = (T + chunk_t - 1) // chunk_t
    unroll = max(1, min(unroll, chunk_t))

    # Weight prep (tiny, one-time): transpose so every in-kernel matmul is
    # (rows, K) @ (K, N); pad H / C lane dims to 128. Padded columns are zero,
    # so tanh(0) = 0 keeps them zero and they contribute nothing to the FC.
    wih_p = jnp.pad(w_ih.T, ((0, 0), (0, Hp - H)))                       # (D, Hp)
    whh_p = jnp.pad(w_hh.T, ((0, Hp - H), (0, Hp - H)))                  # (Hp, Hp)
    brnn_p = jnp.pad((b_ih + b_hh).reshape(1, H), ((0, 0), (0, Hp - H)))  # (1, Hp)
    wfc_p = jnp.pad(w_fc.T, ((0, Hp - H), (0, Cp - C)))                  # (Hp, Cp)
    bfc_p = jnp.pad(b_fc.reshape(1, C), ((0, 0), (0, Cp - C)))           # (1, Cp)

    kernel = _make_kernel(B, T, chunk_t, unroll)

    grid_spec = pltpu.PrefetchScalarGridSpec(
        num_scalar_prefetch=0,
        grid=(n_chunks,),
        in_specs=[
            # x streamed by time chunk straight from its native (B, T, D) layout.
            pl.BlockSpec((B, chunk_t, D), lambda t: (0, t, 0)),
            # Weights / biases: constant block index -> fetched once, resident.
            pl.BlockSpec((D, Hp), lambda t: (0, 0)),
            pl.BlockSpec((Hp, Hp), lambda t: (0, 0)),
            pl.BlockSpec((1, Hp), lambda t: (0, 0)),
            pl.BlockSpec((Hp, Cp), lambda t: (0, 0)),
            pl.BlockSpec((1, Cp), lambda t: (0, 0)),
        ],
        out_specs=pl.BlockSpec((B, Cp), lambda t: (0, 0)),
        scratch_shapes=[
            pltpu.VMEM((B, Hp), jnp.float32),            # h, persists across chunks
            pltpu.VMEM((B, chunk_t, Hp), jnp.float32),   # staged pre-activations
        ],
    )

    out_p = pl.pallas_call(
        kernel,
        out_shape=jax.ShapeDtypeStruct((B, Cp), jnp.float32),
        grid_spec=grid_spec,
        compiler_params=pltpu.CompilerParams(
            dimension_semantics=("arbitrary",),          # serial recurrence over chunks
            vmem_limit_bytes=_vmem_limit_bytes(B, chunk_t, D, Hp, Cp),
        ),
    )(x, wih_p, whh_p, brnn_p, wfc_p, bfc_p)

    # Slice away the class-dim padding.
    return out_p[:, :C]


def _reference(x, w_ih, w_hh, b_ih, b_hh, w_fc, b_fc):
    B, T, D = x.shape
    H = w_ih.shape[0]
    h = jnp.zeros((B, H), jnp.float32)
    for t in range(T):
        h = jnp.tanh(x[:, t, :] @ w_ih.T + b_ih + h @ w_hh.T + b_hh)
    return h @ w_fc.T + b_fc


if __name__ == "__main__":
    # Small shapes consistent with the module's forward.
    B, D, H, C = 2, 16, 32, 8

    key = jax.random.PRNGKey(0)
    ks = jax.random.split(key, 8)
    bound = H ** -0.5
    w_ih = jax.random.uniform(ks[0], (H, D), jnp.float32, -bound, bound)
    w_hh = jax.random.uniform(ks[1], (H, H), jnp.float32, -bound, bound)
    b_ih = jax.random.uniform(ks[2], (H,), jnp.float32, -bound, bound)
    b_hh = jax.random.uniform(ks[3], (H,), jnp.float32, -bound, bound)
    w_fc = jax.random.uniform(ks[4], (C, H), jnp.float32, -bound, bound)
    b_fc = jax.random.uniform(ks[5], (C,), jnp.float32, -bound, bound)

    # Case 1: T divisible by chunk_t -> static-trip-count unrolled fori_loop,
    # two time chunks streamed through the grid with h carried in VMEM scratch.
    T1 = 16
    x1 = jax.random.normal(ks[6], (B, T1, D), jnp.float32)
    out1 = jax.block_until_ready(
        lstm_model_forward(x1, w_ih, w_hh, b_ih, b_hh, w_fc, b_fc, chunk_t=8))
    ref1 = _reference(x1, w_ih, w_hh, b_ih, b_hh, w_fc, b_fc)
    assert out1.shape == (B, C)
    assert jnp.allclose(out1, ref1, atol=1e-5, rtol=1e-5), \
        float(jnp.max(jnp.abs(out1 - ref1)))

    # Case 2: ragged tail (T=12, chunk_t=8) -> dynamic-trip-count pl.loop path
    # on the final partial chunk.
    T2 = 12
    x2 = jax.random.normal(ks[7], (B, T2, D), jnp.float32)
    out2 = jax.block_until_ready(
        lstm_model_forward(x2, w_ih, w_hh, b_ih, b_hh, w_fc, b_fc, chunk_t=8))
    ref2 = _reference(x2, w_ih, w_hh, b_ih, b_hh, w_fc, b_fc)
    assert out2.shape == (B, C)
    assert jnp.allclose(out2, ref2, atol=1e-5, rtol=1e-5), \
        float(jnp.max(jnp.abs(out2 - ref2)))

    print("KERNEL_OK")
</pallas_src>

<mosaic_0001>
module attributes {stable_mosaic.version = 11 : i64} {
  func.func @kernel(%arg0: i32, %arg1: memref<2x8x16xf32, #tpu.memory_space<vmem>>, %arg2: memref<16x128xf32, #tpu.memory_space<vmem>>, %arg3: memref<128x128xf32, #tpu.memory_space<vmem>>, %arg4: memref<1x128xf32, #tpu.memory_space<vmem>>, %arg5: memref<128x128xf32, #tpu.memory_space<vmem>>, %arg6: memref<1x128xf32, #tpu.memory_space<vmem>>, %arg7: memref<2x128xf32, #tpu.memory_space<vmem>>, %arg8: memref<2x128xf32, #tpu.memory_space<vmem>>, %arg9: memref<2x8x128xf32, #tpu.memory_space<vmem>>) attributes {dimension_semantics = [#tpu.dimension_semantics<arbitrary>], iteration_bounds = array<i64: 2>, scalar_prefetch = 0 : i64, scratch_operands = 2 : i64, tpu.core_type = #tpu.core_type<tc>, window_params = [{transform_indices = @transform_0, window_bounds = array<i64: 2, 8, 16>}, {pipeline_mode = #tpu.pipeline_mode<synchronous>, transform_indices = @transform_1, window_bounds = array<i64: 16, 128>}, {pipeline_mode = #tpu.pipeline_mode<synchronous>, transform_indices = @transform_2, window_bounds = array<i64: 128, 128>}, {pipeline_mode = #tpu.pipeline_mode<synchronous>, transform_indices = @transform_3, window_bounds = array<i64: 1, 128>}, {pipeline_mode = #tpu.pipeline_mode<synchronous>, transform_indices = @transform_4, window_bounds = array<i64: 128, 128>}, {pipeline_mode = #tpu.pipeline_mode<synchronous>, transform_indices = @transform_5, window_bounds = array<i64: 1, 128>}, {pipeline_mode = #tpu.pipeline_mode<synchronous>, transform_indices = @transform_6, window_bounds = array<i64: 2, 128>}]} {
    %c0_i32 = arith.constant 0 : i32
    %0 = arith.cmpi eq, %arg0, %c0_i32 : i32
    %1 = arith.extui %0 : i1 to i32
    %c0_i32_0 = arith.constant 0 : i32
    %2 = arith.cmpi ne, %1, %c0_i32_0 : i32
    scf.if %2 {
      %cst_65 = arith.constant 0.000000e+00 : f32
      %107 = vector.broadcast %cst_65 : f32 to vector<2x128xf32>
      %c0_66 = arith.constant 0 : index
      %c0_67 = arith.constant 0 : index
      %108 = vector.load %arg8[%c0_66, %c0_67] : memref<2x128xf32, #tpu.memory_space<vmem>>, vector<2x128xf32>
      tpu.vector_store %arg8[%c0_66, %c0_67], %107 {strides = array<i32>} : memref<2x128xf32, #tpu.memory_space<vmem>>, vector<2x128xf32>,
    } else {
    }
    %c0 = arith.constant 0 : index
    %c0_1 = arith.constant 0 : index
    %3 = vector.load %arg2[%c0, %c0_1] : memref<16x128xf32, #tpu.memory_space<vmem>>, vector<16x128xf32>
    %c0_2 = arith.constant 0 : index
    %c0_3 = arith.constant 0 : index
    %4 = vector.load %arg4[%c0_2, %c0_3] : memref<1x128xf32, #tpu.memory_space<vmem>>, vector<1x128xf32>
    %c0_4 = arith.constant 0 : index
    %c0_5 = arith.constant 0 : index
    %c0_6 = arith.constant 0 : index
    %5 = vector.load %arg1[%c0_4, %c0_5, %c0_6] : memref<2x8x16xf32, #tpu.memory_space<vmem>>, vector<1x8x16xf32>
    %6 = vector.shape_cast %5 : vector<1x8x16xf32> to vector<8x16xf32>
    %cst = arith.constant dense<0.000000e+00> : vector<8x128xf32>
    %7 = tpu.matmul %6, %3, %cst {dimension_numbers = #tpu.dot_dimension_numbers<[1], [0], [0], [1], [0, 0, 1, 1], [], []>} : vector<8x16xf32>, vector<16x128xf32>, vector<8x128xf32> -> vector<8x128xf32>
    %8 = vector.broadcast %4 : vector<1x128xf32> to vector<8x128xf32>
    %9 = arith.addf %7, %8 : vector<8x128xf32>
    %c0_7 = arith.constant 0 : index
    %c0_8 = arith.constant 0 : index
    %c0_9 = arith.constant 0 : index
    %10 = vector.load %arg9[%c0_7, %c0_8, %c0_9] : memref<2x8x128xf32, #tpu.memory_space<vmem>>, vector<1x8x128xf32>
    %11 = vector.shape_cast %10 : vector<1x8x128xf32> to vector<8x128xf32>
    %12 = vector.shape_cast %9 : vector<8x128xf32> to vector<1x8x128xf32>
    tpu.vector_store %arg9[%c0_7, %c0_8, %c0_9], %12 {strides = array<i32>} : memref<2x8x128xf32, #tpu.memory_space<vmem>>, vector<1x8x128xf32>,
    %c1 = arith.constant 1 : index
    %c0_10 = arith.constant 0 : index
    %c0_11 = arith.constant 0 : index
    %13 = vector.load %arg1[%c1, %c0_10, %c0_11] : memref<2x8x16xf32, #tpu.memory_space<vmem>>, vector<1x8x16xf32>
    %14 = vector.shape_cast %13 : vector<1x8x16xf32> to vector<8x16xf32>
    %cst_12 = arith.constant dense<0.000000e+00> : vector<8x128xf32>
    %15 = tpu.matmul %14, %3, %cst_12 {dimension_numbers = #tpu.dot_dimension_numbers<[1], [0], [0], [1], [0, 0, 1, 1], [], []>} : vector<8x16xf32>, vector<16x128xf32>, vector<8x128xf32> -> vector<8x128xf32>
    %16 = vector.broadcast %4 : vector<1x128xf32> to vector<8x128xf32>
    %17 = arith.addf %15, %16 : vector<8x128xf32>
    %c1_13 = arith.constant 1 : index
    %c0_14 = arith.constant 0 : index
    %c0_15 = arith.constant 0 : index
    %18 = vector.load %arg9[%c1_13, %c0_14, %c0_15] : memref<2x8x128xf32, #tpu.memory_space<vmem>>, vector<1x8x128xf32>
    %19 = vector.shape_cast %18 : vector<1x8x128xf32> to vector<8x128xf32>
    %20 = vector.shape_cast %17 : vector<8x128xf32> to vector<1x8x128xf32>
    tpu.vector_store %arg9[%c1_13, %c0_14, %c0_15], %20 {strides = array<i32>} : memref<2x8x128xf32, #tpu.memory_space<vmem>>, vector<1x8x128xf32>,
    %c0_16 = arith.constant 0 : index
    %c0_17 = arith.constant 0 : index
    %21 = vector.load %arg3[%c0_16, %c0_17] : memref<128x128xf32, #tpu.memory_space<vmem>>, vector<128x128xf32>
    %c0_18 = arith.constant 0 : index
    %c0_19 = arith.constant 0 : index
    %22 = vector.load %arg8[%c0_18, %c0_19] : memref<2x128xf32, #tpu.memory_space<vmem>>, vector<2x128xf32>
    %c0_i32_20 = arith.constant 0 : i32
    %c0_21 = arith.constant 0 : index
    %23 = arith.index_cast %c0_i32_20 : i32 to index
    %c0_22 = arith.constant 0 : index
    %24 = vector.load %arg9[%c0_21, %23, %c0_22] : memref<2x8x128xf32, #tpu.memory_space<vmem>>, vector<1x1x128xf32>
    %25 = vector.shape_cast %24 : vector<1x1x128xf32> to vector<1x128xf32>
    %c1_23 = arith.constant 1 : index
    %26 = arith.index_cast %c0_i32_20 : i32 to index
    %c0_24 = arith.constant 0 : index
    %27 = vector.load %arg9[%c1_23, %26, %c0_24] : memref<2x8x128xf32, #tpu.memory_space<vmem>>, vector<1x1x128xf32>
    %28 = vector.shape_cast %27 : vector<1x1x128xf32> to vector<1x128xf32>
    %29 = tpu.concatenate %25, %28 in 0 : vector<1x128xf32>, vector<1x128xf32> -> vector<2x128xf32>
    %cst_25 = arith.constant dense<0.000000e+00> : vector<2x128xf32>
    %30 = tpu.matmul %22, %21, %cst_25 {dimension_numbers = #tpu.dot_dimension_numbers<[1], [0], [0], [1], [0, 0, 1, 1], [], []>} : vector<2x128xf32>, vector<128x128xf32>, vector<2x128xf32> -> vector<2x128xf32>
    %31 = arith.addf %29, %30 : vector<2x128xf32>
    %32 = math.tanh %31 : vector<2x128xf32>
    %c1_i32 = arith.constant 1 : i32
    %c0_26 = arith.constant 0 : index
    %33 = arith.index_cast %c1_i32 : i32 to index
    %c0_27 = arith.constant 0 : index
    %34 = vector.load %arg9[%c0_26, %33, %c0_27] : memref<2x8x128xf32, #tpu.memory_space<vmem>>, vector<1x1x128xf32>
    %35 = vector.shape_cast %34 : vector<1x1x128xf32> to vector<1x128xf32>
    %c1_28 = arith.constant 1 : index
    %36 = arith.index_cast %c1_i32 : i32 to index
    %c0_29 = arith.constant 0 : index
    %37 = vector.load %arg9[%c1_28, %36, %c0_29] : memref<2x8x128xf32, #tpu.memory_space<vmem>>, vector<1x1x128xf32>
    %38 = vector.shape_cast %37 : vector<1x1x128xf32> to vector<1x128xf32>
    %39 = tpu.concatenate %35, %38 in 0 : vector<1x128xf32>, vector<1x128xf32> -> vector<2x128xf32>
    %cst_30 = arith.constant dense<0.000000e+00> : vector<2x128xf32>
    %40 = tpu.matmul %32, %21, %cst_30 {dimension_numbers = #tpu.dot_dimension_numbers<[1], [0], [0], [1], [0, 0, 1, 1], [], []>} : vector<2x128xf32>, vector<128x128xf32>, vector<2x128xf32> -> vector<2x128xf32>
    %41 = arith.addf %39, %40 : vector<2x128xf32>
    %42 = math.tanh %41 : vector<2x128xf32>
    %c2_i32 = arith.constant 2 : i32
    %c0_31 = arith.constant 0 : index
    %43 = arith.index_cast %c2_i32 : i32 to index
    %c0_32 = arith.constant 0 : index
    %44 = vector.load %arg9[%c0_31, %43, %c0_32] : memref<2x8x128xf32, #tpu.memory_space<vmem>>, vector<1x1x128xf32>
    %45 = vector.shape_cast %44 : vector<1x1x128xf32> to vector<1x128xf32>
    %c1_33 = arith.constant 1 : index
    %46 = arith.index_cast %c2_i32 : i32 to index
    %c0_34 = arith.constant 0 : index
    %47 = vector.load %arg9[%c1_33, %46, %c0_34] : memref<2x8x128xf32, #tpu.memory_space<vmem>>, vector<1x1x128xf32>
    %48 = vector.shape_cast %47 : vector<1x1x128xf32> to vector<1x128xf32>
    %49 = tpu.concatenate %45, %48 in 0 : vector<1x128xf32>, vector<1x128xf32> -> vector<2x128xf32>
    %cst_35 = arith.constant dense<0.000000e+00> : vector<2x128xf32>
    %50 = tpu.matmul %42, %21, %cst_35 {dimension_numbers = #tpu.dot_dimension_numbers<[1], [0], [0], [1], [0, 0, 1, 1], [], []>} : vector<2x128xf32>, vector<128x128xf32>, vector<2x128xf32> -> vector<2x128xf32>
    %51 = arith.addf %49, %50 : vector<2x128xf32>
    %52 = math.tanh %51 : vector<2x128xf32>
    %c3_i32 = arith.constant 3 : i32
    %c0_36 = arith.constant 0 : index
    %53 = arith.index_cast %c3_i32 : i32 to index
    %c0_37 = arith.constant 0 : index
    %54 = vector.load %arg9[%c0_36, %53, %c0_37] : memref<2x8x128xf32, #tpu.memory_space<vmem>>, vector<1x1x128xf32>
    %55 = vector.shape_cast %54 : vector<1x1x128xf32> to vector<1x128xf32>
    %c1_38 = arith.constant 1 : index
    %56 = arith.index_cast %c3_i32 : i32 to index
    %c0_39 = arith.constant 0 : index
    %57 = vector.load %arg9[%c1_38, %56, %c0_39] : memref<2x8x128xf32, #tpu.memory_space<vmem>>, vector<1x1x128xf32>
    %58 = vector.shape_cast %57 : vector<1x1x128xf32> to vector<1x128xf32>
    %59 = tpu.concatenate %55, %58 in 0 : vector<1x128xf32>, vector<1x128xf32> -> vector<2x128xf32>
    %cst_40 = arith.constant dense<0.000000e+00> : vector<2x128xf32>
    %60 = tpu.matmul %52, %21, %cst_40 {dimension_numbers = #tpu.dot_dimension_numbers<[1], [0], [0], [1], [0, 0, 1, 1], [], []>} : vector<2x128xf32>, vector<128x128xf32>, vector<2x128xf32> -> vector<2x128xf32>
    %61 = arith.addf %59, %60 : vector<2x128xf32>
    %62 = math.tanh %61 : vector<2x128xf32>
    %c4_i32 = arith.constant 4 : i32
    %c0_41 = arith.constant 0 : index
    %63 = arith.index_cast %c4_i32 : i32 to index
    %c0_42 = arith.constant 0 : index
    %64 = vector.load %arg9[%c0_41, %63, %c0_42] : memref<2x8x128xf32, #tpu.memory_space<vmem>>, vector<1x1x128xf32>
    %65 = vector.shape_cast %64 : vector<1x1x128xf32> to vector<1x128xf32>
    %c1_43 = arith.constant 1 : index
    %66 = arith.index_cast %c4_i32 : i32 to index
    %c0_44 = arith.constant 0 : index
    %67 = vector.load %arg9[%c1_43, %66, %c0_44] : memref<2x8x128xf32, #tpu.memory_space<vmem>>, vector<1x1x128xf32>
    %68 = vector.shape_cast %67 : vector<1x1x128xf32> to vector<1x128xf32>
    %69 = tpu.concatenate %65, %68 in 0 : vector<1x128xf32>, vector<1x128xf32> -> vector<2x128xf32>
    %cst_45 = arith.constant dense<0.000000e+00> : vector<2x128xf32>
    %70 = tpu.matmul %62, %21, %cst_45 {dimension_numbers = #tpu.dot_dimension_numbers<[1], [0], [0], [1], [0, 0, 1, 1], [], []>} : vector<2x128xf32>, vector<128x128xf32>, vector<2x128xf32> -> vector<2x128xf32>
    %71 = arith.addf %69, %70 : vector<2x128xf32>
    %72 = math.tanh %71 : vector<2x128xf32>
    %c5_i32 = arith.constant 5 : i32
    %c0_46 = arith.constant 0 : index
    %73 = arith.index_cast %c5_i32 : i32 to index
    %c0_47 = arith.constant 0 : index
    %74 = vector.load %arg9[%c0_46, %73, %c0_47] : memref<2x8x128xf32, #tpu.memory_space<vmem>>, vector<1x1x128xf32>
    %75 = vector.shape_cast %74 : vector<1x1x128xf32> to vector<1x128xf32>
    %c1_48 = arith.constant 1 : index
    %76 = arith.index_cast %c5_i32 : i32 to index
    %c0_49 = arith.constant 0 : index
    %77 = vector.load %arg9[%c1_48, %76, %c0_49] : memref<2x8x128xf32, #tpu.memory_space<vmem>>, vector<1x1x128xf32>
    %78 = vector.shape_cast %77 : vector<1x1x128xf32> to vector<1x128xf32>
    %79 = tpu.concatenate %75, %78 in 0 : vector<1x128xf32>, vector<1x128xf32> -> vector<2x128xf32>
    %cst_50 = arith.constant dense<0.000000e+00> : vector<2x128xf32>
    %80 = tpu.matmul %72, %21, %cst_50 {dimension_numbers = #tpu.dot_dimension_numbers<[1], [0], [0], [1], [0, 0, 1, 1], [], []>} : vector<2x128xf32>, vector<128x128xf32>, vector<2x128xf32> -> vector<2x128xf32>
    %81 = arith.addf %79, %80 : vector<2x128xf32>
    %82 = math.tanh %81 : vector<2x128xf32>
    %c6_i32 = arith.constant 6 : i32
    %c0_51 = arith.constant 0 : index
    %83 = arith.index_cast %c6_i32 : i32 to index
    %c0_52 = arith.constant 0 : index
    %84 = vector.load %arg9[%c0_51, %83, %c0_52] : memref<2x8x128xf32, #tpu.memory_space<vmem>>, vector<1x1x128xf32>
    %85 = vector.shape_cast %84 : vector<1x1x128xf32> to vector<1x128xf32>
    %c1_53 = arith.constant 1 : index
    %86 = arith.index_cast %c6_i32 : i32 to index
    %c0_54 = arith.constant 0 : index
    %87 = vector.load %arg9[%c1_53, %86, %c0_54] : memref<2x8x128xf32, #tpu.memory_space<vmem>>, vector<1x1x128xf32>
    %88 = vector.shape_cast %87 : vector<1x1x128xf32> to vector<1x128xf32>
    %89 = tpu.concatenate %85, %88 in 0 : vector<1x128xf32>, vector<1x128xf32> -> vector<2x128xf32>
    %cst_55 = arith.constant dense<0.000000e+00> : vector<2x128xf32>
    %90 = tpu.matmul %82, %21, %cst_55 {dimension_numbers = #tpu.dot_dimension_numbers<[1], [0], [0], [1], [0, 0, 1, 1], [], []>} : vector<2x128xf32>, vector<128x128xf32>, vector<2x128xf32> -> vector<2x128xf32>
    %91 = arith.addf %89, %90 : vector<2x128xf32>
    %92 = math.tanh %91 : vector<2x128xf32>
    %c7_i32 = arith.constant 7 : i32
    %c0_56 = arith.constant 0 : index
    %93 = arith.index_cast %c7_i32 : i32 to index
    %c0_57 = arith.constant 0 : index
    %94 = vector.load %arg9[%c0_56, %93, %c0_57] : memref<2x8x128xf32, #tpu.memory_space<vmem>>, vector<1x1x128xf32>
    %95 = vector.shape_cast %94 : vector<1x1x128xf32> to vector<1x128xf32>
    %c1_58 = arith.constant 1 : index
    %96 = arith.index_cast %c7_i32 : i32 to index
    %c0_59 = arith.constant 0 : index
    %97 = vector.load %arg9[%c1_58, %96, %c0_59] : memref<2x8x128xf32, #tpu.memory_space<vmem>>, vector<1x1x128xf32>
    %98 = vector.shape_cast %97 : vector<1x1x128xf32> to vector<1x128xf32>
    %99 = tpu.concatenate %95, %98 in 0 : vector<1x128xf32>, vector<1x128xf32> -> vector<2x128xf32>
    %cst_60 = arith.constant dense<0.000000e+00> : vector<2x128xf32>
    %100 = tpu.matmul %92, %21, %cst_60 {dimension_numbers = #tpu.dot_dimension_numbers<[1], [0], [0], [1], [0, 0, 1, 1], [], []>} : vector<2x128xf32>, vector<128x128xf32>, vector<2x128xf32> -> vector<2x128xf32>
    %101 = arith.addf %99, %100 : vector<2x128xf32>
    %102 = math.tanh %101 : vector<2x128xf32>
    %c8_i32 = arith.constant 8 : i32
    %c0_61 = arith.constant 0 : index
    %c0_62 = arith.constant 0 : index
    %103 = vector.load %arg8[%c0_61, %c0_62] : memref<2x128xf32, #tpu.memory_space<vmem>>, vector<2x128xf32>
    tpu.vector_store %arg8[%c0_61, %c0_62], %102 {strides = array<i32>} : memref<2x128xf32, #tpu.memory_space<vmem>>, vector<2x128xf32>,
    %c1_i32_63 = arith.constant 1 : i32
    %104 = arith.cmpi eq, %arg0, %c1_i32_63 : i32
    %105 = arith.extui %104 : i1 to i32
    %c0_i32_64 = arith.constant 0 : i32
    %106 = arith.cmpi ne, %105, %c0_i32_64 : i32
    scf.if %106 {
      %c0_65 = arith.constant 0 : index
      %c0_66 = arith.constant 0 : index
      %107 = vector.load %arg8[%c0_65, %c0_66] : memref<2x128xf32, #tpu.memory_space<vmem>>, vector<2x128xf32>
      %c0_67 = arith.constant 0 : index
      %c0_68 = arith.constant 0 : index
      %108 = vector.load %arg5[%c0_67, %c0_68] : memref<128x128xf32, #tpu.memory_space<vmem>>, vector<128x128xf32>
      %cst_69 = arith.constant dense<0.000000e+00> : vector<2x128xf32>
      %109 = tpu.matmul %107, %108, %cst_69 {dimension_numbers = #tpu.dot_dimension_numbers<[1], [0], [0], [1], [0, 0, 1, 1], [], []>} : vector<2x128xf32>, vector<128x128xf32>, vector<2x128xf32> -> vector<2x128xf32>
      %c0_70 = arith.constant 0 : index
      %c0_71 = arith.constant 0 : index
      %110 = vector.load %arg6[%c0_70, %c0_71] : memref<1x128xf32, #tpu.memory_space<vmem>>, vector<1x128xf32>
      %111 = vector.broadcast %110 : vector<1x128xf32> to vector<2x128xf32>
      %112 = arith.addf %109, %111 : vector<2x128xf32>
      %c0_72 = arith.constant 0 : index
      %c0_73 = arith.constant 0 : index
      %113 = vector.load %arg7[%c0_72, %c0_73] : memref<2x128xf32, #tpu.memory_space<vmem>>, vector<2x128xf32>
      tpu.vector_store %arg7[%c0_72, %c0_73], %112 {strides = array<i32>} : memref<2x128xf32, #tpu.memory_space<vmem>>, vector<2x128xf32>,
    } else {
    }
    return
  }
  func.func @transform_0(%arg0: i32) -> (i32, i32, i32) {
    %c0_i32 = arith.constant 0 : i32
    %c0_i32_0 = arith.constant 0 : i32
    %c0_i32_1 = arith.constant 0 : i32
    return %c0_i32, %arg0, %c0_i32_0 : i32, i32, i32
  }
  func.func @transform_1(%arg0: i32) -> (i32, i32) {
    %c0_i32 = arith.constant 0 : i32
    %c0_i32_0 = arith.constant 0 : i32
    %c0_i32_1 = arith.constant 0 : i32
    return %c0_i32, %c0_i32_0 : i32, i32
  }
  func.func @transform_2(%arg0: i32) -> (i32, i32) {
    %c0_i32 = arith.constant 0 : i32
    %c0_i32_0 = arith.constant 0 : i32
    %c0_i32_1 = arith.constant 0 : i32
    return %c0_i32, %c0_i32_0 : i32, i32
  }
  func.func @transform_3(%arg0: i32) -> (i32, i32) {
    %c0_i32 = arith.constant 0 : i32
    %c0_i32_0 = arith.constant 0 : i32
    %c0_i32_1 = arith.constant 0 : i32
    return %c0_i32, %c0_i32_0 : i32, i32
  }
  func.func @transform_4(%arg0: i32) -> (i32, i32) {
    %c0_i32 = arith.constant 0 : i32
    %c0_i32_0 = arith.constant 0 : i32
    %c0_i32_1 = arith.constant 0 : i32
    return %c0_i32, %c0_i32_0 : i32, i32
  }
  func.func @transform_5(%arg0: i32) -> (i32, i32) {
    %c0_i32 = arith.constant 0 : i32
    %c0_i32_0 = arith.constant 0 : i32
    %c0_i32_1 = arith.constant 0 : i32
    return %c0_i32, %c0_i32_0 : i32, i32
  }
  func.func @transform_6(%arg0: i32) -> (i32, i32) {
    %c0_i32 = arith.constant 0 : i32
    %c0_i32_0 = arith.constant 0 : i32
    %c0_i32_1 = arith.constant 0 : i32
    return %c0_i32, %c0_i32_0 : i32, i32
  }
}

</mosaic_0001>

<llo_original>
// kernel: tpu_custom_call.1
$region0: #{tpu_custom_call.1}
  #allocation0 [shape = 'u32[]', space=smem, size = 0x4, offset = 0x4, fixed_abs, tag = 'smem constant byte address 0x4 - core index']
  #allocation1 [shape = 'u32[144,128]{1,0:T(1,128)}', space=vmem, size = 0x12000, scoped, tag = 'internal scratch']
  #allocation2 [shape = 'f32[2,128]{1,0:T(2,128)}', space=vmem, size = 0x400, scoped, tag = 'scratch operand']
  #allocation3 [shape = 'f32[2,8,128]{2,1,0:T(8,128)}', space=vmem, size = 0x2000, scoped, tag = 'scratch operand']
  %s0 = inlined_call_operand.hbm [shape: f32[2,16,16], index: 0, kind: input, shape index: {}]
  %s1 = inlined_call_operand.hbm [shape: f32[16,128], index: 1, kind: input, shape index: {}]
  %s2 = inlined_call_operand.hbm [shape: f32[128,128], index: 2, kind: input, shape index: {}]
  %s3 = inlined_call_operand.vmem [shape: f32[1,128], index: 3, kind: input, shape index: {}]
  %s4 = inlined_call_operand.hbm [shape: f32[128,128], index: 4, kind: input, shape index: {}]
  %s5 = inlined_call_operand.vmem [shape: f32[1,128], index: 5, kind: input, shape index: {}]
  %s6 = inlined_call_operand.hbm [shape: f32[2,128], index: 6, kind: output, shape index: {}]
  %s7 = sld [smem:[#allocation0]]
  $region81: #{tpu_custom_call.1} parent=0
    _
  %s9 = ssub.s32 1, %s7
  %s10 = scalar_select 0, %s9, %s7
  $region1: #{tpu_custom_call.1} parent=0
    #allocation4 [shape = 'u8[16384]{0}', space=vmem, size = 0x4000, scoped, tag = 'input window, operand 0']
    #allocation5 [shape = 's32[2]{0}', space=sflag, size = 0x8, scoped, tag = 'scoped memory for tpu_custom_call.1']
    #allocation6 [shape = 's32[2]{0}', space=sflag, size = 0x8, scoped, tag = 'scoped memory for tpu_custom_call.1']
    #allocation7 [shape = 'u8[8192]{0}', space=vmem, size = 0x2000, scoped, tag = 'input window, operand 1, single buffered']
    #allocation8 [shape = 's32[1]{0}', space=sflag, size = 0x4, scoped, tag = 'scoped memory for tpu_custom_call.1']
    #allocation9 [shape = 'u8[65536]{0}', space=vmem, size = 0x10000, scoped, tag = 'input window, operand 2, single buffered']
    #allocation10 [shape = 'u8[65536]{0}', space=vmem, size = 0x10000, scoped, tag = 'input window, operand 4, single buffered']
    #allocation11 [shape = 's32[1]{0}', space=sflag, size = 0x4, scoped, tag = 'scoped memory for tpu_custom_call.1']
    #allocation12 [shape = 'u8[1024]{0}', space=vmem, size = 0x400, scoped, tag = 'output window, operand 0, single buffered']
    %11 = vsyncpa [#allocation5], 0
    %s12 = scalar_lea.sflag [#allocation5], 1
    %13 = vsyncpa %s12, 0
    %14 = vsyncpa [#allocation8], 0
    %15 = vsyncpa [#allocation11], 0
    %16 = vsyncpa [#allocation6], 0
    loop: start=0, step=1, limit=4
    $region2: #{tpu_custom_call.1} parent=1 // loop_pre_header
      _
    $region3: #{tpu_custom_call.1} parent=1 // loop_header
      %s18 = sphi 0, %s22
      %p19 = scmp.ge.s32.totalorder %s18, 4
      %s28 = sphi 0, %s30
      %s31 = sphi 0, %s28
      %s32 = sphi 0, %s31
      %s48 = sphi 0, %s32
      %s52 = sphi 0, %s52
      %s54 = sphi 0, %s52
      %s55 = sphi 0, %s54
      %s69 = sphi 0, %s55
      %s73 = sphi 0, %s73
      %s75 = sphi 0, %s73
      %s76 = sphi 0, %s75
      %s90 = sphi 0, %s76
      %s94 = sphi 0, %s94
      %s96 = sphi 0, %s94
      %s97 = sphi 0, %s96
      %s111 = sphi 0, %s97
      %s115 = sphi 0, %s115
      %s117 = sphi 0, %s115
      %s118 = sphi 0, %s117
      %s132 = sphi 0, %s118
      %s136 = sphi 0, %s136
      %s138 = sphi 0, %s136
      %s139 = sphi 0, %s138
      %s153 = sphi 0, %s139
      %s157 = sphi 0, %s157
      %s159 = sphi 0, %s157
      %s160 = sphi 0, %s159
      %s174 = sphi 0, %s160
    $region4: #{tpu_custom_call.1} parent=1 // loop_header_branch
      %21 = sbr.rel (%p19) target = $region8
    $region5: #{tpu_custom_call.1} parent=1 // loop_body
      %s23 = ssub.s32 %s18, 1
      %s24 = ssub.s32 %s18, 2
      %s25 = sadd.s32 %s18, 1
      %s26 = ssub.s32 %s18, %s25
      %p27 = scmp.eq.s32.totalorder %s26, 0
      %s29 = sadd.s32 %s28, 1
      %s30 = scalar_select %p27, %s28, %s29
      %p33 = pneg %p27
      %p34 = scmp.eq.s32.totalorder %s18, 1
      %p35 = por %p33, %p34
      %p36 = scmp.ne.s32.totalorder %s28, %s31
      %p37 = scmp.eq.s32.totalorder %s18, 0
      %p38 = por %p36, %p37
      %p39 = scmp.ne.s32.totalorder %s28, %s31
      %p40 = scmp.eq.s32.totalorder %s23, 1
      %p41 = por %p39, %p40
      %p42 = scmp.ne.s32.totalorder %s31, %s32
      %p43 = scmp.eq.s32.totalorder %s23, 0
      %p44 = por %p42, %p43
      %p45 = scmp.ne.s32.totalorder %s31, %s32
      %p46 = scmp.eq.s32.totalorder %s24, 1
      %p47 = por %p45, %p46
      %p49 = scmp.ne.s32.totalorder %s32, %s48
      %p50 = scmp.eq.s32.totalorder %s24, 0
      %p51 = por %p49, %p50
      %s53 = sadd.s32 %s52, 1
      %p56 = scmp.eq.s32.totalorder %s18, 1
      %p57 = scmp.ne.s32.totalorder %s52, %s54
      %p58 = scmp.eq.s32.totalorder %s18, 0
      %p59 = por %p57, %p58
      %p60 = scmp.ne.s32.totalorder %s52, %s54
      %p61 = scmp.eq.s32.totalorder %s23, 1
      %p62 = por %p60, %p61
      %p63 = scmp.ne.s32.totalorder %s54, %s55
      %p64 = scmp.eq.s32.totalorder %s23, 0
      %p65 = por %p63, %p64
      %p66 = scmp.ne.s32.totalorder %s54, %s55
      %p67 = scmp.eq.s32.totalorder %s24, 1
      %p68 = por %p66, %p67
      %p70 = scmp.ne.s32.totalorder %s55, %s69
      %p71 = scmp.eq.s32.totalorder %s24, 0
      %p72 = por %p70, %p71
      %s74 = sadd.s32 %s73, 1
      %p77 = scmp.eq.s32.totalorder %s18, 1
      %p78 = scmp.ne.s32.totalorder %s73, %s75
      %p79 = scmp.eq.s32.totalorder %s18, 0
      %p80 = por %p78, %p79
      %p81 = scmp.ne.s32.totalorder %s73, %s75
      %p82 = scmp.eq.s32.totalorder %s23, 1
      %p83 = por %p81, %p82
      %p84 = scmp.ne.s32.totalorder %s75, %s76
      %p85 = scmp.eq.s32.totalorder %s23, 0
      %p86 = por %p84, %p85
      %p87 = scmp.ne.s32.totalorder %s75, %s76
      %p88 = scmp.eq.s32.totalorder %s24, 1
      %p89 = por %p87, %p88
      %p91 = scmp.ne.s32.totalorder %s76, %s90
      %p92 = scmp.eq.s32.totalorder %s24, 0
      %p93 = por %p91, %p92
      %s95 = sadd.s32 %s94, 1
      %p98 = scmp.eq.s32.totalorder %s18, 1
      %p99 = scmp.ne.s32.totalorder %s94, %s96
      %p100 = scmp.eq.s32.totalorder %s18, 0
      %p101 = por %p99, %p100
      %p102 = scmp.ne.s32.totalorder %s94, %s96
      %p103 = scmp.eq.s32.totalorder %s23, 1
      %p104 = por %p102, %p103
      %p105 = scmp.ne.s32.totalorder %s96, %s97
      %p106 = scmp.eq.s32.totalorder %s23, 0
      %p107 = por %p105, %p106
      %p108 = scmp.ne.s32.totalorder %s96, %s97
      %p109 = scmp.eq.s32.totalorder %s24, 1
      %p110 = por %p108, %p109
      %p112 = scmp.ne.s32.totalorder %s97, %s111
      %p113 = scmp.eq.s32.totalorder %s24, 0
      %p114 = por %p112, %p113
      %s116 = sadd.s32 %s115, 1
      %p119 = scmp.eq.s32.totalorder %s18, 1
      %p120 = scmp.ne.s32.totalorder %s115, %s117
      %p121 = scmp.eq.s32.totalorder %s18, 0
      %p122 = por %p120, %p121
      %p123 = scmp.ne.s32.totalorder %s115, %s117
      %p124 = scmp.eq.s32.totalorder %s23, 1
      %p125 = por %p123, %p124
      %p126 = scmp.ne.s32.totalorder %s117, %s118
      %p127 = scmp.eq.s32.totalorder %s23, 0
      %p128 = por %p126, %p127
      %p129 = scmp.ne.s32.totalorder %s117, %s118
      %p130 = scmp.eq.s32.totalorder %s24, 1
      %p131 = por %p129, %p130
      %p133 = scmp.ne.s32.totalorder %s118, %s132
      %p134 = scmp.eq.s32.totalorder %s24, 0
      %p135 = por %p133, %p134
      %s137 = sadd.s32 %s136, 1
      %p140 = scmp.eq.s32.totalorder %s18, 1
      %p141 = scmp.ne.s32.totalorder %s136, %s138
      %p142 = scmp.eq.s32.totalorder %s18, 0
      %p143 = por %p141, %p142
      %p144 = scmp.ne.s32.totalorder %s136, %s138
      %p145 = scmp.eq.s32.totalorder %s23, 1
      %p146 = por %p144, %p145
      %p147 = scmp.ne.s32.totalorder %s138, %s139
      %p148 = scmp.eq.s32.totalorder %s23, 0
      %p149 = por %p147, %p148
      %p150 = scmp.ne.s32.totalorder %s138, %s139
      %p151 = scmp.eq.s32.totalorder %s24, 1
      %p152 = por %p150, %p151
      %p154 = scmp.ne.s32.totalorder %s139, %s153
      %p155 = scmp.eq.s32.totalorder %s24, 0
      %p156 = por %p154, %p155
      %s158 = sadd.s32 %s157, 1
      %p161 = scmp.eq.s32.totalorder %s18, 1
      %p162 = scmp.ne.s32.totalorder %s157, %s159
      %p163 = scmp.eq.s32.totalorder %s18, 0
      %p164 = por %p162, %p163
      %p165 = scmp.ne.s32.totalorder %s157, %s159
      %p166 = scmp.eq.s32.totalorder %s23, 1
      %p167 = por %p165, %p166
      %p168 = scmp.ne.s32.totalorder %s159, %s160
      %p169 = scmp.eq.s32.totalorder %s23, 0
      %p170 = por %p168, %p169
      %p171 = scmp.ne.s32.totalorder %s159, %s160
      %p172 = scmp.eq.s32.totalorder %s24, 1
      %p173 = por %p171, %p172
      %p175 = scmp.ne.s32.totalorder %s160, %s174
      %p176 = scmp.eq.s32.totalorder %s24, 0
      %p177 = por %p175, %p176
      %p178 = scmp.le.s32.totalorder 1, %s18
      %p179 = scmp.lt.s32.totalorder %s18, 3
      %p180 = pnand %p178, %p179
      %p181 = pneg %p180
      // Predicated region
      $region9: #{tpu_custom_call.1} parent=5 // pred_check
        _
      $region10: #{tpu_custom_call.1} parent=5 // pred_check_branch
        %183 = sbr.rel (%p180) target = $region12
      $region11: #{tpu_custom_call.1} parent=5 // pred_region
        %s184 = ssub.s32 %s18, 1
        // Predicated region
        $region13: #{tpu_custom_call.1} parent=11 // pred_check
          %p185 = pneg %p65
        $region14: #{tpu_custom_call.1} parent=11 // pred_check_branch
          %187 = sbr.rel (%p185) target = $region16
        $region15: #{tpu_custom_call.1} parent=11 // pred_region
          %s189 = ssub.s32 256, 256
          %190 = vsyncadd [#allocation8], %s189
          %s191 = sshll.u32 [#allocation7], 4
          %s192 = int_to_ptr.vmem [resolvable:$true] %s191
          %197 = dma.hbm_to_vmem [thread:$0]  %s1, 256, %s192, [#allocation8], 128, 128, 8
        $region16: #{tpu_custom_call.1} parent=11 // pred_fallthru
          _
        // Predicated region
        $region17: #{tpu_custom_call.1} parent=11 // pred_check
          %p198 = pneg %p86
        $region18: #{tpu_custom_call.1} parent=11 // pred_check_branch
          %200 = sbr.rel (%p198) target = $region20
        $region19: #{tpu_custom_call.1} parent=11 // pred_region
          %s202 = ssub.s32 2048, 2048
          %203 = vsyncadd [#allocation8], %s202
          %s204 = sshll.u32 [#allocation9], 4
          %s205 = int_to_ptr.vmem [resolvable:$true] %s204
          %210 = dma.hbm_to_vmem [thread:$0]  %s2, 2048, %s205, [#allocation8], 128, 128, 8
        $region20: #{tpu_custom_call.1} parent=11 // pred_fallthru
          _
        // Predicated region
        $region21: #{tpu_custom_call.1} parent=11 // pred_check
          %p211 = pneg %p107
        $region22: #{tpu_custom_call.1} parent=11 // pred_check_branch
          %213 = sbr.rel (%p211) target = $region24
        $region23: #{tpu_custom_call.1} parent=11 // pred_region
          _
        $region24: #{tpu_custom_call.1} parent=11 // pred_fallthru
          _
        // Predicated region
        $region25: #{tpu_custom_call.1} parent=11 // pred_check
          %p214 = pneg %p128
        $region26: #{tpu_custom_call.1} parent=11 // pred_check_branch
          %216 = sbr.rel (%p214) target = $region28
        $region27: #{tpu_custom_call.1} parent=11 // pred_region
          %s218 = ssub.s32 2048, 2048
          %219 = vsyncadd [#allocation11], %s218
          %s220 = sshll.u32 [#allocation10], 4
          %s221 = int_to_ptr.vmem [resolvable:$true] %s220
          %226 = dma.hbm_to_vmem [thread:$0]  %s4, 2048, %s221, [#allocation11], 128, 128, 8
        $region28: #{tpu_custom_call.1} parent=11 // pred_fallthru
          _
        // Predicated region
        $region29: #{tpu_custom_call.1} parent=11 // pred_check
          %p227 = pneg %p149
        $region30: #{tpu_custom_call.1} parent=11 // pred_check_branch
          %229 = sbr.rel (%p227) target = $region32
        $region31: #{tpu_custom_call.1} parent=11 // pred_region
          _
        $region32: #{tpu_custom_call.1} parent=11 // pred_fallthru
          _
      $region12: #{tpu_custom_call.1} parent=5 // pred_fallthru
        _
      %p230 = scmp.lt.s32.totalorder %s18, 2
      // Predicated region
      $region33: #{tpu_custom_call.1} parent=5 // pred_check
        %p231 = pneg %p230
      $region34: #{tpu_custom_call.1} parent=5 // pred_check_branch
        %233 = sbr.rel (%p231) target = $region36
      $region35: #{tpu_custom_call.1} parent=5 // pred_region
        // Predicated region
        $region37: #{tpu_custom_call.1} parent=35 // pred_check
          %p234 = pneg %p38
        $region38: #{tpu_custom_call.1} parent=35 // pred_check_branch
          %236 = sbr.rel (%p234) target = $region40
        $region39: #{tpu_custom_call.1} parent=35 // pred_region
          %s237 = sand.u32 %s28, 1
          %s238 = scalar_lea.sflag [#allocation5], %s237
          %s239 = sand.u32 %s28, 1
          %s240 = smul.addr %s239, 16
          %s241 = scalar_lea.vmem [#allocation4], %s240
          %s243 = ssub.s32 256, 256
          %244 = vsyncadd %s238, %s243
          %s245 = smul.addr %s18, 128
          %s246 = scalar_lea.hbm %s0, %s245
          %s247 = sshll.u32 %s241, 4
          %s248 = int_to_ptr.vmem [resolvable:$true] %s247
          %253 = dma.hbm_to_vmem [thread:$0]  %s246, 256, %s248, %s238, 256, 128, 8
        $region40: #{tpu_custom_call.1} parent=35 // pred_fallthru
          _
      $region36: #{tpu_custom_call.1} parent=5 // pred_fallthru
        _
      %p254 = scmp.le.s32.totalorder 1, %s18
      %p255 = scmp.lt.s32.totalorder %s18, 3
      %p256 = pnand %p254, %p255
      %p257 = pneg %p256
      // Predicated region
      $region41: #{tpu_custom_call.1} parent=5 // pred_check
        _
      $region42: #{tpu_custom_call.1} parent=5 // pred_check_branch
        %259 = sbr.rel (%p256) target = $region44
      $region43: #{tpu_custom_call.1} parent=5 // pred_region
        %s260 = ssub.s32 %s18, 1
        %s261 = sand.u32 %s31, 1
        %s262 = scalar_lea.sflag [#allocation5], %s261
        %s263 = sand.u32 %s31, 1
        %s264 = smul.addr %s263, 16
        %s265 = scalar_lea.vmem [#allocation4], %s264
        // Predicated region
        $region45: #{tpu_custom_call.1} parent=43 // pred_check
          %p266 = pneg %p44
        $region46: #{tpu_custom_call.1} parent=43 // pred_check_branch
          %268 = sbr.rel (%p266) target = $region48
        $region47: #{tpu_custom_call.1} parent=43 // pred_region
          %269 = dma.done %s262, 256
        $region48: #{tpu_custom_call.1} parent=43 // pred_fallthru
          _
        // Predicated region
        $region49: #{tpu_custom_call.1} parent=43 // pred_check
          %p270 = pneg %p65
        $region50: #{tpu_custom_call.1} parent=43 // pred_check_branch
          %272 = sbr.rel (%p270) target = $region52
        $region51: #{tpu_custom_call.1} parent=43 // pred_region
          %273 = dma.done [#allocation8], 256
        $region52: #{tpu_custom_call.1} parent=43 // pred_fallthru
          _
        // Predicated region
        $region53: #{tpu_custom_call.1} parent=43 // pred_check
          %p274 = pneg %p86
        $region54: #{tpu_custom_call.1} parent=43 // pred_check_branch
          %276 = sbr.rel (%p274) target = $region56
        $region55: #{tpu_custom_call.1} parent=43 // pred_region
          %277 = dma.done [#allocation8], 2048
        $region56: #{tpu_custom_call.1} parent=43 // pred_fallthru
          _
        // Predicated region
        $region57: #{tpu_custom_call.1} parent=43 // pred_check
          %p278 = pneg %p128
        $region58: #{tpu_custom_call.1} parent=43 // pred_check_branch
          %280 = sbr.rel (%p278) target = $region60
        $region59: #{tpu_custom_call.1} parent=43 // pred_region
          %281 = dma.done [#allocation11], 2048
        $region60: #{tpu_custom_call.1} parent=43 // pred_fallthru
          _
        %s282 = sand.u32 %s31, 1
        %s283 = scalar_lea.sflag [#allocation5], %s282
        %s284 = sand.u32 %s31, 1
        %s285 = smul.addr %s284, 16
        %s286 = scalar_lea.vmem [#allocation4], %s285
        %p287 = pneg %p44
        %p288 = pneg %p41
        %p289 = pneg %p65
        %p290 = pneg %p62
        %p291 = pneg %p86
        %p292 = pneg %p83
        %p293 = pneg %p107
        %p294 = pneg %p104
        %p295 = pneg %p128
        %p296 = pneg %p125
        %p297 = pneg %p149
        %p298 = pneg %p146
        %p299 = pneg %p170
        %p300 = pneg %p167
        %p301 = scmp.eq.s32.totalorder %s23, 0
        // Predicated region
        $region61: #{tpu_custom_call.1} parent=43 // pred_check
          %p302 = pneg %p301
        $region62: #{tpu_custom_call.1} parent=43 // pred_check_branch
          %304 = sbr.rel (%p302) target = $region64
        $region63: #{tpu_custom_call.1} parent=43 // pred_region
          %305 = vst [vmem:[#allocation2] sm:$0x3] 0.0
        $region64: #{tpu_custom_call.1} parent=43 // pred_fallthru
          _
        %v306 = vld [vmem:[#allocation7] sm:$0xff]
        %v307 = vld [vmem:[#allocation7 + $0x8] sm:$0xff]
        %v308 = vld [vmem:[%s3] sm:$0x1]
        %v309 = vld [vmem:[%s265] sm:$0xff]
        %v311 = vlaneseq
        %v312 = vshrl.u32 %v311, 7
        %v313 = vsub.s32 0, %v312
        %v314 = vrot.slane %v308, %v313
        %vm316 = vcmask 130048
        %v318 = vsel %vm316, %v309, 0
        %320 = vmatprep.subr.mxu0 0.0
        %321 = vmatpush1.msra.mxu0 0.0
        %322 = vmatprep.subr.mxu0 0.0
        %323 = vmatpush1.msra.mxu0 0.0
        %324 = vmatprep.subr.mxu0 0.0
        %325 = vmatpush1.msra.mxu0 0.0
        %326 = vmatprep.subr.mxu0 0.0
        %327 = vmatpush1.msra.mxu0 0.0
        %328 = vmatprep.subr.mxu0 0.0
        %329 = vmatpush1.msra.mxu0 0.0
        %330 = vmatprep.subr.mxu0 0.0
        %331 = vmatpush1.msra.mxu0 0.0
        %332 = vmatprep.subr.mxu0 0.0
        %333 = vmatpush1.msra.mxu0 0.0
        %334 = vmatprep.subr.mxu0 0.0
        %335 = vmatpush1.msra.mxu0 0.0
        %336 = vmatprep.subr.mxu0 0.0
        %337 = vmatpush1.msra.mxu0 0.0
        %338 = vmatprep.subr.mxu0 0.0
        %339 = vmatpush1.msra.mxu0 0.0
        %340 = vmatprep.subr.mxu0 0.0
        %341 = vmatpush1.msra.mxu0 0.0
        %342 = vmatprep.subr.mxu0 0.0
        %343 = vmatpush1.msra.mxu0 0.0
        %344 = vmatprep.subr.mxu0 0.0
        %345 = vmatpush1.msra.mxu0 0.0
        %346 = vmatprep.subr.mxu0 0.0
        %347 = vmatpush1.msra.mxu0 0.0
        %348 = vmatprep.subr.mxu0 0.0
        %349 = vmatpush1.msra.mxu0 %v307
        %350 = vmatprep.subr.mxu0 0.0
        %351 = vmatpush1.msra.mxu0 %v306
        %352 = vmatprep.subr.mxu0 0.0
        %353 = vmatpush2.msra.mxu0 0.0
        %354 = vmatprep.subr.mxu0 0.0
        %355 = vmatpush2.msra.mxu0 0.0
        %356 = vmatprep.subr.mxu0 0.0
        %357 = vmatpush2.msra.mxu0 0.0
        %358 = vmatprep.subr.mxu0 0.0
        %359 = vmatpush2.msra.mxu0 0.0
        %360 = vmatprep.subr.mxu0 0.0
        %361 = vmatpush2.msra.mxu0 0.0
        %362 = vmatprep.subr.mxu0 0.0
        %363 = vmatpush2.msra.mxu0 0.0
        %364 = vmatprep.subr.mxu0 0.0
        %365 = vmatpush2.msra.mxu0 0.0
        %366 = vmatprep.subr.mxu0 0.0
        %367 = vmatpush2.msra.mxu0 0.0
        %368 = vmatprep.subr.mxu0 0.0
        %369 = vmatpush2.msra.mxu0 0.0
        %370 = vmatprep.subr.mxu0 0.0
        %371 = vmatpush2.msra.mxu0 0.0
        %372 = vmatprep.subr.mxu0 0.0
        %373 = vmatpush2.msra.mxu0 0.0
        %374 = vmatprep.subr.mxu0 0.0
        %375 = vmatpush2.msra.mxu0 0.0
        %376 = vmatprep.subr.mxu0 0.0
        %377 = vmatpush2.msra.mxu0 0.0
        %378 = vmatprep.subr.mxu0 0.0
        %379 = vmatpush2.msra.mxu0 0.0
        %380 = vmatprep.subr.mxu0 0.0
        %381 = vmatpush2.msra.mxu0 0.0
        %382 = vmatprep.subr.mxu0 0.0
        %383 = vmatpush2.msra.mxu0 0.0
        %384 = vmatprep.mubr.f32.mxu0 0.0
        %385 = vmatmul.mubr.f32.gmra.mxu0 %v318
        %v386 = vpop.f32.mrf.mxu0
        %v387 = vadd.f32 %v314, %v386
        %v388 = vpop.f32.mrf.mxu0
        %389 = vdwg.mxu0
        %390 = vst [vmem:[#allocation3] sm:$0xff] %v387
        %s391 = scalar_lea.vmem %s265, 8 [#allocation4]
        %v392 = vld [vmem:[%s391] sm:$0xff]
        %v394 = vsel %vm316, %v392, 0
        %396 = vmatprep.subr.mxu0 0.0
        %397 = vmatpush1.msra.mxu0 0.0
        %398 = vmatprep.subr.mxu0 0.0
        %399 = vmatpush1.msra.mxu0 0.0
        %400 = vmatprep.subr.mxu0 0.0
        %401 = vmatpush1.msra.mxu0 0.0
        %402 = vmatprep.subr.mxu0 0.0
        %403 = vmatpush1.msra.mxu0 0.0
        %404 = vmatprep.subr.mxu0 0.0
        %405 = vmatpush1.msra.mxu0 0.0
        %406 = vmatprep.subr.mxu0 0.0
        %407 = vmatpush1.msra.mxu0 0.0
        %408 = vmatprep.subr.mxu0 0.0
        %409 = vmatpush1.msra.mxu0 0.0
        %410 = vmatprep.subr.mxu0 0.0
        %411 = vmatpush1.msra.mxu0 0.0
        %412 = vmatprep.subr.mxu0 0.0
        %413 = vmatpush1.msra.mxu0 0.0
        %414 = vmatprep.subr.mxu0 0.0
        %415 = vmatpush1.msra.mxu0 0.0
        %416 = vmatprep.subr.mxu0 0.0
        %417 = vmatpush1.msra.mxu0 0.0
        %418 = vmatprep.subr.mxu0 0.0
        %419 = vmatpush1.msra.mxu0 0.0
        %420 = vmatprep.subr.mxu0 0.0
        %421 = vmatpush1.msra.mxu0 0.0
        %422 = vmatprep.subr.mxu0 0.0
        %423 = vmatpush1.msra.mxu0 0.0
        %424 = vmatprep.subr.mxu0 0.0
        %425 = vmatpush1.msra.mxu0 %v307
        %426 = vmatprep.subr.mxu0 0.0
        %427 = vmatpush1.msra.mxu0 %v306
        %428 = vmatprep.subr.mxu0 0.0
        %429 = vmatpush2.msra.mxu0 0.0
        %430 = vmatprep.subr.mxu0 0.0
        %431 = vmatpush2.msra.mxu0 0.0
        %432 = vmatprep.subr.mxu0 0.0
        %433 = vmatpush2.msra.mxu0 0.0
        %434 = vmatprep.subr.mxu0 0.0
        %435 = vmatpush2.msra.mxu0 0.0
        %436 = vmatprep.subr.mxu0 0.0
        %437 = vmatpush2.msra.mxu0 0.0
        %438 = vmatprep.subr.mxu0 0.0
        %439 = vmatpush2.msra.mxu0 0.0
        %440 = vmatprep.subr.mxu0 0.0
        %441 = vmatpush2.msra.mxu0 0.0
        %442 = vmatprep.subr.mxu0 0.0
        %443 = vmatpush2.msra.mxu0 0.0
        %444 = vmatprep.subr.mxu0 0.0
        %445 = vmatpush2.msra.mxu0 0.0
        %446 = vmatprep.subr.mxu0 0.0
        %447 = vmatpush2.msra.mxu0 0.0
        %448 = vmatprep.subr.mxu0 0.0
        %449 = vmatpush2.msra.mxu0 0.0
        %450 = vmatprep.subr.mxu0 0.0
        %451 = vmatpush2.msra.mxu0 0.0
        %452 = vmatprep.subr.mxu0 0.0
        %453 = vmatpush2.msra.mxu0 0.0
        %454 = vmatprep.subr.mxu0 0.0
        %455 = vmatpush2.msra.mxu0 0.0
        %456 = vmatprep.subr.mxu0 0.0
        %457 = vmatpush2.msra.mxu0 0.0
        %458 = vmatprep.subr.mxu0 0.0
        %459 = vmatpush2.msra.mxu0 0.0
        %460 = vmatprep.mubr.f32.mxu0 0.0
        %461 = vmatmul.mubr.f32.gmra.mxu0 %v394
        %v462 = vpop.f32.mrf.mxu0
        %v463 = vadd.f32 %v314, %v462
        %v464 = vpop.f32.mrf.mxu0
        %465 = vdwg.mxu0
        %s466 = scalar_lea.vmem [#allocation3], 8
        %467 = vst [vmem:[%s466] sm:$0xff] %v463
        %v468 = vld [vmem:[#allocation9] sm:$0xff]
        %v469 = vld [vmem:[#allocation9 + $0x8] sm:$0xff]
        %v470 = vld [vmem:[#allocation9 + $0x10] sm:$0xff]
        %v471 = vld [vmem:[#allocation9 + $0x18] sm:$0xff]
        %v472 = vld [vmem:[#allocation9 + $0x20] sm:$0xff]
        %v473 = vld [vmem:[#allocation9 + $0x28] sm:$0xff]
        %v474 = vld [vmem:[#allocation9 + $0x30] sm:$0xff]
        %v475 = vld [vmem:[#allocation9 + $0x38] sm:$0xff]
        %v476 = vld [vmem:[#allocation9 + $0x40] sm:$0xff]
        %v477 = vld [vmem:[#allocation9 + $0x48] sm:$0xff]
        %v478 = vld [vmem:[#allocation9 + $0x50] sm:$0xff]
        %v479 = vld [vmem:[#allocation9 + $0x58] sm:$0xff]
        %v480 = vld [vmem:[#allocation9 + $0x60] sm:$0xff]
        %v481 = vld [vmem:[#allocation9 + $0x68] sm:$0xff]
        %v482 = vld [vmem:[#allocation9 + $0x70] sm:$0xff]
        %v483 = vld [vmem:[#allocation9 + $0x78] sm:$0xff]
        %v484 = vld [vmem:[#allocation2] sm:$0x3]
        %v485 = vld [vmem:[#allocation3] sm:$0x1]
        %v486 = vld [vmem:[%s466] sm:$0x1]
        %v488 = vrot.slane %v486, 7
        %vm490 = vcmask 1040384
        %v491 = vsel %vm490, %v485, %v488
        %492 = vmatprep.subr.mxu0 0.0
        %493 = vmatpush1.msra.mxu0 %v483
        %494 = vmatprep.subr.mxu0 0.0
        %495 = vmatpush1.msra.mxu0 %v482
        %496 = vmatprep.subr.mxu0 0.0
        %497 = vmatpush1.msra.mxu0 %v481
        %498 = vmatprep.subr.mxu0 0.0
        %499 = vmatpush1.msra.mxu0 %v480
        %500 = vmatprep.subr.mxu0 0.0
        %501 = vmatpush1.msra.mxu0 %v479
        %502 = vmatprep.subr.mxu0 0.0
        %503 = vmatpush1.msra.mxu0 %v478
        %504 = vmatprep.subr.mxu0 0.0
        %505 = vmatpush1.msra.mxu0 %v477
        %506 = vmatprep.subr.mxu0 0.0
        %507 = vmatpush1.msra.mxu0 %v476
        %508 = vmatprep.subr.mxu0 0.0
        %509 = vmatpush1.msra.mxu0 %v475
        %510 = vmatprep.subr.mxu0 0.0
        %511 = vmatpush1.msra.mxu0 %v474
        %512 = vmatprep.subr.mxu0 0.0
        %513 = vmatpush1.msra.mxu0 %v473
        %514 = vmatprep.subr.mxu0 0.0
        %515 = vmatpush1.msra.mxu0 %v472
        %516 = vmatprep.subr.mxu0 0.0
        %517 = vmatpush1.msra.mxu0 %v471
        %518 = vmatprep.subr.mxu0 0.0
        %519 = vmatpush1.msra.mxu0 %v470
        %520 = vmatprep.subr.mxu0 0.0
        %521 = vmatpush1.msra.mxu0 %v469
        %522 = vmatprep.subr.mxu0 0.0
        %523 = vmatpush1.msra.mxu0 %v468
        %524 = vmatprep.subr.mxu0 0.0
        %525 = vmatpush2.msra.mxu0 0.0
        %526 = vmatprep.subr.mxu0 0.0
        %527 = vmatpush2.msra.mxu0 0.0
        %528 = vmatprep.subr.mxu0 0.0
        %529 = vmatpush2.msra.mxu0 0.0
        %530 = vmatprep.subr.mxu0 0.0
        %531 = vmatpush2.msra.mxu0 0.0
        %532 = vmatprep.subr.mxu0 0.0
        %533 = vmatpush2.msra.mxu0 0.0
        %534 = vmatprep.subr.mxu0 0.0
        %535 = vmatpush2.msra.mxu0 0.0
        %536 = vmatprep.subr.mxu0 0.0
        %537 = vmatpush2.msra.mxu0 0.0
        %538 = vmatprep.subr.mxu0 0.0
        %539 = vmatpush2.msra.mxu0 0.0
        %540 = vmatprep.subr.mxu0 0.0
        %541 = vmatpush2.msra.mxu0 0.0
        %542 = vmatprep.subr.mxu0 0.0
        %543 = vmatpush2.msra.mxu0 0.0
        %544 = vmatprep.subr.mxu0 0.0
        %545 = vmatpush2.msra.mxu0 0.0
        %546 = vmatprep.subr.mxu0 0.0
        %547 = vmatpush2.msra.mxu0 0.0
        %548 = vmatprep.subr.mxu0 0.0
        %549 = vmatpush2.msra.mxu0 0.0
        %550 = vmatprep.subr.mxu0 0.0
        %551 = vmatpush2.msra.mxu0 0.0
        %552 = vmatprep.subr.mxu0 0.0
        %553 = vmatpush2.msra.mxu0 0.0
        %554 = vmatprep.subr.mxu0 0.0
        %555 = vmatpush2.msra.mxu0 0.0
        %556 = vmatprep.mubr.f32.mxu0 0.0
        %557 = vmatmul.mubr.f32.gmra.mxu0 %v484
        %v558 = vpop.f32.mrf.mxu0
        %v559 = vadd.f32 0.0, %v558
        %v560 = vpop.f32.mrf.mxu0
        %561 = vdwg.mxu0
        %v562 = vadd.f32 %v491, %v559
        %v563 = vtanh.pop %v562
        %v564 = vld [vmem:[#allocation3 + $0x1] sm:$0x1]
        %v565 = vld [vmem:[%s466 + $0x1] sm:$0x1]
        %v567 = vrot.slane %v565, 7
        %v569 = vsel %vm490, %v564, %v567
        %570 = vmatprep.subr.mxu0 0.0
        %571 = vmatpush1.msra.mxu0 %v483
        %572 = vmatprep.subr.mxu0 0.0
        %573 = vmatpush1.msra.mxu0 %v482
        %574 = vmatprep.subr.mxu0 0.0
        %575 = vmatpush1.msra.mxu0 %v481
        %576 = vmatprep.subr.mxu0 0.0
        %577 = vmatpush1.msra.mxu0 %v480
        %578 = vmatprep.subr.mxu0 0.0
        %579 = vmatpush1.msra.mxu0 %v479
        %580 = vmatprep.subr.mxu0 0.0
        %581 = vmatpush1.msra.mxu0 %v478
        %582 = vmatprep.subr.mxu0 0.0
        %583 = vmatpush1.msra.mxu0 %v477
        %584 = vmatprep.subr.mxu0 0.0
        %585 = vmatpush1.msra.mxu0 %v476
        %586 = vmatprep.subr.mxu0 0.0
        %587 = vmatpush1.msra.mxu0 %v475
        %588 = vmatprep.subr.mxu0 0.0
        %589 = vmatpush1.msra.mxu0 %v474
        %590 = vmatprep.subr.mxu0 0.0
        %591 = vmatpush1.msra.mxu0 %v473
        %592 = vmatprep.subr.mxu0 0.0
        %593 = vmatpush1.msra.mxu0 %v472
        %594 = vmatprep.subr.mxu0 0.0
        %595 = vmatpush1.msra.mxu0 %v471
        %596 = vmatprep.subr.mxu0 0.0
        %597 = vmatpush1.msra.mxu0 %v470
        %598 = vmatprep.subr.mxu0 0.0
        %599 = vmatpush1.msra.mxu0 %v469
        %600 = vmatprep.subr.mxu0 0.0
        %601 = vmatpush1.msra.mxu0 %v468
        %602 = vmatprep.subr.mxu0 0.0
        %603 = vmatpush2.msra.mxu0 0.0
        %604 = vmatprep.subr.mxu0 0.0
        %605 = vmatpush2.msra.mxu0 0.0
        %606 = vmatprep.subr.mxu0 0.0
        %607 = vmatpush2.msra.mxu0 0.0
        %608 = vmatprep.subr.mxu0 0.0
        %609 = vmatpush2.msra.mxu0 0.0
        %610 = vmatprep.subr.mxu0 0.0
        %611 = vmatpush2.msra.mxu0 0.0
        %612 = vmatprep.subr.mxu0 0.0
        %613 = vmatpush2.msra.mxu0 0.0
        %614 = vmatprep.subr.mxu0 0.0
        %615 = vmatpush2.msra.mxu0 0.0
        %616 = vmatprep.subr.mxu0 0.0
        %617 = vmatpush2.msra.mxu0 0.0
        %618 = vmatprep.subr.mxu0 0.0
        %619 = vmatpush2.msra.mxu0 0.0
        %620 = vmatprep.subr.mxu0 0.0
        %621 = vmatpush2.msra.mxu0 0.0
        %622 = vmatprep.subr.mxu0 0.0
        %623 = vmatpush2.msra.mxu0 0.0
        %624 = vmatprep.subr.mxu0 0.0
        %625 = vmatpush2.msra.mxu0 0.0
        %626 = vmatprep.subr.mxu0 0.0
        %627 = vmatpush2.msra.mxu0 0.0
        %628 = vmatprep.subr.mxu0 0.0
        %629 = vmatpush2.msra.mxu0 0.0
        %630 = vmatprep.subr.mxu0 0.0
        %631 = vmatpush2.msra.mxu0 0.0
        %632 = vmatprep.subr.mxu0 0.0
        %633 = vmatpush2.msra.mxu0 0.0
        %634 = vmatprep.mubr.f32.mxu0 0.0
        %635 = vmatmul.mubr.f32.gmra.mxu0 %v563
        %v636 = vpop.f32.mrf.mxu0
        %v637 = vadd.f32 0.0, %v636
        %v638 = vpop.f32.mrf.mxu0
        %639 = vdwg.mxu0
        %v640 = vadd.f32 %v569, %v637
        %v641 = vtanh.pop %v640
        %v642 = vld [vmem:[#allocation3 + $0x2] sm:$0x1]
        %v643 = vld [vmem:[%s466 + $0x2] sm:$0x1]
        %v645 = vrot.slane %v643, 7
        %v647 = vsel %vm490, %v642, %v645
        %648 = vmatprep.subr.mxu0 0.0
        %649 = vmatpush1.msra.mxu0 %v483
        %650 = vmatprep.subr.mxu0 0.0
        %651 = vmatpush1.msra.mxu0 %v482
        %652 = vmatprep.subr.mxu0 0.0
        %653 = vmatpush1.msra.mxu0 %v481
        %654 = vmatprep.subr.mxu0 0.0
        %655 = vmatpush1.msra.mxu0 %v480
        %656 = vmatprep.subr.mxu0 0.0
        %657 = vmatpush1.msra.mxu0 %v479
        %658 = vmatprep.subr.mxu0 0.0
        %659 = vmatpush1.msra.mxu0 %v478
        %660 = vmatprep.subr.mxu0 0.0
        %661 = vmatpush1.msra.mxu0 %v477
        %662 = vmatprep.subr.mxu0 0.0
        %663 = vmatpush1.msra.mxu0 %v476
        %664 = vmatprep.subr.mxu0 0.0
        %665 = vmatpush1.msra.mxu0 %v475
        %666 = vmatprep.subr.mxu0 0.0
        %667 = vmatpush1.msra.mxu0 %v474
        %668 = vmatprep.subr.mxu0 0.0
        %669 = vmatpush1.msra.mxu0 %v473
        %670 = vmatprep.subr.mxu0 0.0
        %671 = vmatpush1.msra.mxu0 %v472
        %672 = vmatprep.subr.mxu0 0.0
        %673 = vmatpush1.msra.mxu0 %v471
        %674 = vmatprep.subr.mxu0 0.0
        %675 = vmatpush1.msra.mxu0 %v470
        %676 = vmatprep.subr.mxu0 0.0
        %677 = vmatpush1.msra.mxu0 %v469
        %678 = vmatprep.subr.mxu0 0.0
        %679 = vmatpush1.msra.mxu0 %v468
        %680 = vmatprep.subr.mxu0 0.0
        %681 = vmatpush2.msra.mxu0 0.0
        %682 = vmatprep.subr.mxu0 0.0
        %683 = vmatpush2.msra.mxu0 0.0
        %684 = vmatprep.subr.mxu0 0.0
        %685 = vmatpush2.msra.mxu0 0.0
        %686 = vmatprep.subr.mxu0 0.0
        %687 = vmatpush2.msra.mxu0 0.0
        %688 = vmatprep.subr.mxu0 0.0
        %689 = vmatpush2.msra.mxu0 0.0
        %690 = vmatprep.subr.mxu0 0.0
        %691 = vmatpush2.msra.mxu0 0.0
        %692 = vmatprep.subr.mxu0 0.0
        %693 = vmatpush2.msra.mxu0 0.0
        %694 = vmatprep.subr.mxu0 0.0
        %695 = vmatpush2.msra.mxu0 0.0
        %696 = vmatprep.subr.mxu0 0.0
        %697 = vmatpush2.msra.mxu0 0.0
        %698 = vmatprep.subr.mxu0 0.0
        %699 = vmatpush2.msra.mxu0 0.0
        %700 = vmatprep.subr.mxu0 0.0
        %701 = vmatpush2.msra.mxu0 0.0
        %702 = vmatprep.subr.mxu0 0.0
        %703 = vmatpush2.msra.mxu0 0.0
        %704 = vmatprep.subr.mxu0 0.0
        %705 = vmatpush2.msra.mxu0 0.0
        %706 = vmatprep.subr.mxu0 0.0
        %707 = vmatpush2.msra.mxu0 0.0
        %708 = vmatprep.subr.mxu0 0.0
        %709 = vmatpush2.msra.mxu0 0.0
        %710 = vmatprep.subr.mxu0 0.0
        %711 = vmatpush2.msra.mxu0 0.0
        %712 = vmatprep.mubr.f32.mxu0 0.0
        %713 = vmatmul.mubr.f32.gmra.mxu0 %v641
        %v714 = vpop.f32.mrf.mxu0
        %v715 = vadd.f32 0.0, %v714
        %v716 = vpop.f32.mrf.mxu0
        %717 = vdwg.mxu0
        %v718 = vadd.f32 %v647, %v715
        %v719 = vtanh.pop %v718
        %v720 = vld [vmem:[#allocation3 + $0x3] sm:$0x1]
        %v721 = vld [vmem:[%s466 + $0x3] sm:$0x1]
        %v723 = vrot.slane %v721, 7
        %v725 = vsel %vm490, %v720, %v723
        %726 = vmatprep.subr.mxu0 0.0
        %727 = vmatpush1.msra.mxu0 %v483
        %728 = vmatprep.subr.mxu0 0.0
        %729 = vmatpush1.msra.mxu0 %v482
        %730 = vmatprep.subr.mxu0 0.0
        %731 = vmatpush1.msra.mxu0 %v481
        %732 = vmatprep.subr.mxu0 0.0
        %733 = vmatpush1.msra.mxu0 %v480
        %734 = vmatprep.subr.mxu0 0.0
        %735 = vmatpush1.msra.mxu0 %v479
        %736 = vmatprep.subr.mxu0 0.0
        %737 = vmatpush1.msra.mxu0 %v478
        %738 = vmatprep.subr.mxu0 0.0
        %739 = vmatpush1.msra.mxu0 %v477
        %740 = vmatprep.subr.mxu0 0.0
        %741 = vmatpush1.msra.mxu0 %v476
        %742 = vmatprep.subr.mxu0 0.0
        %743 = vmatpush1.msra.mxu0 %v475
        %744 = vmatprep.subr.mxu0 0.0
        %745 = vmatpush1.msra.mxu0 %v474
        %746 = vmatprep.subr.mxu0 0.0
        %747 = vmatpush1.msra.mxu0 %v473
        %748 = vmatprep.subr.mxu0 0.0
        %749 = vmatpush1.msra.mxu0 %v472
        %750 = vmatprep.subr.mxu0 0.0
        %751 = vmatpush1.msra.mxu0 %v471
        %752 = vmatprep.subr.mxu0 0.0
        %753 = vmatpush1.msra.mxu0 %v470
        %754 = vmatprep.subr.mxu0 0.0
        %755 = vmatpush1.msra.mxu0 %v469
        %756 = vmatprep.subr.mxu0 0.0
        %757 = vmatpush1.msra.mxu0 %v468
        %758 = vmatprep.subr.mxu0 0.0
        %759 = vmatpush2.msra.mxu0 0.0
        %760 = vmatprep.subr.mxu0 0.0
        %761 = vmatpush2.msra.mxu0 0.0
        %762 = vmatprep.subr.mxu0 0.0
        %763 = vmatpush2.msra.mxu0 0.0
        %764 = vmatprep.subr.mxu0 0.0
        %765 = vmatpush2.msra.mxu0 0.0
        %766 = vmatprep.subr.mxu0 0.0
        %767 = vmatpush2.msra.mxu0 0.0
        %768 = vmatprep.subr.mxu0 0.0
        %769 = vmatpush2.msra.mxu0 0.0
        %770 = vmatprep.subr.mxu0 0.0
        %771 = vmatpush2.msra.mxu0 0.0
        %772 = vmatprep.subr.mxu0 0.0
        %773 = vmatpush2.msra.mxu0 0.0
        %774 = vmatprep.subr.mxu0 0.0
        %775 = vmatpush2.msra.mxu0 0.0
        %776 = vmatprep.subr.mxu0 0.0
        %777 = vmatpush2.msra.mxu0 0.0
        %778 = vmatprep.subr.mxu0 0.0
        %779 = vmatpush2.msra.mxu0 0.0
        %780 = vmatprep.subr.mxu0 0.0
        %781 = vmatpush2.msra.mxu0 0.0
        %782 = vmatprep.subr.mxu0 0.0
        %783 = vmatpush2.msra.mxu0 0.0
        %784 = vmatprep.subr.mxu0 0.0
        %785 = vmatpush2.msra.mxu0 0.0
        %786 = vmatprep.subr.mxu0 0.0
        %787 = vmatpush2.msra.mxu0 0.0
        %788 = vmatprep.subr.mxu0 0.0
        %789 = vmatpush2.msra.mxu0 0.0
        %790 = vmatprep.mubr.f32.mxu0 0.0
        %791 = vmatmul.mubr.f32.gmra.mxu0 %v719
        %v792 = vpop.f32.mrf.mxu0
        %v793 = vadd.f32 0.0, %v792
        %v794 = vpop.f32.mrf.mxu0
        %795 = vdwg.mxu0
        %v796 = vadd.f32 %v725, %v793
        %v797 = vtanh.pop %v796
        %v798 = vld [vmem:[#allocation3 + $0x4] sm:$0x1]
        %v799 = vld [vmem:[%s466 + $0x4] sm:$0x1]
        %v801 = vrot.slane %v799, 7
        %v803 = vsel %vm490, %v798, %v801
        %804 = vmatprep.subr.mxu0 0.0
        %805 = vmatpush1.msra.mxu0 %v483
        %806 = vmatprep.subr.mxu0 0.0
        %807 = vmatpush1.msra.mxu0 %v482
        %808 = vmatprep.subr.mxu0 0.0
        %809 = vmatpush1.msra.mxu0 %v481
        %810 = vmatprep.subr.mxu0 0.0
        %811 = vmatpush1.msra.mxu0 %v480
        %812 = vmatprep.subr.mxu0 0.0
        %813 = vmatpush1.msra.mxu0 %v479
        %814 = vmatprep.subr.mxu0 0.0
        %815 = vmatpush1.msra.mxu0 %v478
        %816 = vmatprep.subr.mxu0 0.0
        %817 = vmatpush1.msra.mxu0 %v477
        %818 = vmatprep.subr.mxu0 0.0
        %819 = vmatpush1.msra.mxu0 %v476
        %820 = vmatprep.subr.mxu0 0.0
        %821 = vmatpush1.msra.mxu0 %v475
        %822 = vmatprep.subr.mxu0 0.0
        %823 = vmatpush1.msra.mxu0 %v474
        %824 = vmatprep.subr.mxu0 0.0
        %825 = vmatpush1.msra.mxu0 %v473
        %826 = vmatprep.subr.mxu0 0.0
        %827 = vmatpush1.msra.mxu0 %v472
        %828 = vmatprep.subr.mxu0 0.0
        %829 = vmatpush1.msra.mxu0 %v471
        %830 = vmatprep.subr.mxu0 0.0
        %831 = vmatpush1.msra.mxu0 %v470
        %832 = vmatprep.subr.mxu0 0.0
        %833 = vmatpush1.msra.mxu0 %v469
        %834 = vmatprep.subr.mxu0 0.0
        %835 = vmatpush1.msra.mxu0 %v468
        %836 = vmatprep.subr.mxu0 0.0
        %837 = vmatpush2.msra.mxu0 0.0
        %838 = vmatprep.subr.mxu0 0.0
        %839 = vmatpush2.msra.mxu0 0.0
        %840 = vmatprep.subr.mxu0 0.0
        %841 = vmatpush2.msra.mxu0 0.0
        %842 = vmatprep.subr.mxu0 0.0
        %843 = vmatpush2.msra.mxu0 0.0
        %844 = vmatprep.subr.mxu0 0.0
        %845 = vmatpush2.msra.mxu0 0.0
        %846 = vmatprep.subr.mxu0 0.0
        %847 = vmatpush2.msra.mxu0 0.0
        %848 = vmatprep.subr.mxu0 0.0
        %849 = vmatpush2.msra.mxu0 0.0
        %850 = vmatprep.subr.mxu0 0.0
        %851 = vmatpush2.msra.mxu0 0.0
        %852 = vmatprep.subr.mxu0 0.0
        %853 = vmatpush2.msra.mxu0 0.0
        %854 = vmatprep.subr.mxu0 0.0
        %855 = vmatpush2.msra.mxu0 0.0
        %856 = vmatprep.subr.mxu0 0.0
        %857 = vmatpush2.msra.mxu0 0.0
        %858 = vmatprep.subr.mxu0 0.0
        %859 = vmatpush2.msra.mxu0 0.0
        %860 = vmatprep.subr.mxu0 0.0
        %861 = vmatpush2.msra.mxu0 0.0
        %862 = vmatprep.subr.mxu0 0.0
        %863 = vmatpush2.msra.mxu0 0.0
        %864 = vmatprep.subr.mxu0 0.0
        %865 = vmatpush2.msra.mxu0 0.0
        %866 = vmatprep.subr.mxu0 0.0
        %867 = vmatpush2.msra.mxu0 0.0
        %868 = vmatprep.mubr.f32.mxu0 0.0
        %869 = vmatmul.mubr.f32.gmra.mxu0 %v797
        %v870 = vpop.f32.mrf.mxu0
        %v871 = vadd.f32 0.0, %v870
        %v872 = vpop.f32.mrf.mxu0
        %873 = vdwg.mxu0
        %v874 = vadd.f32 %v803, %v871
        %v875 = vtanh.pop %v874
        %v876 = vld [vmem:[#allocation3 + $0x5] sm:$0x1]
        %v877 = vld [vmem:[%s466 + $0x5] sm:$0x1]
        %v879 = vrot.slane %v877, 7
        %v881 = vsel %vm490, %v876, %v879
        %882 = vmatprep.subr.mxu0 0.0
        %883 = vmatpush1.msra.mxu0 %v483
        %884 = vmatprep.subr.mxu0 0.0
        %885 = vmatpush1.msra.mxu0 %v482
        %886 = vmatprep.subr.mxu0 0.0
        %887 = vmatpush1.msra.mxu0 %v481
        %888 = vmatprep.subr.mxu0 0.0
        %889 = vmatpush1.msra.mxu0 %v480
        %890 = vmatprep.subr.mxu0 0.0
        %891 = vmatpush1.msra.mxu0 %v479
        %892 = vmatprep.subr.mxu0 0.0
        %893 = vmatpush1.msra.mxu0 %v478
        %894 = vmatprep.subr.mxu0 0.0
        %895 = vmatpush1.msra.mxu0 %v477
        %896 = vmatprep.subr.mxu0 0.0
        %897 = vmatpush1.msra.mxu0 %v476
        %898 = vmatprep.subr.mxu0 0.0
        %899 = vmatpush1.msra.mxu0 %v475
        %900 = vmatprep.subr.mxu0 0.0
        %901 = vmatpush1.msra.mxu0 %v474
        %902 = vmatprep.subr.mxu0 0.0
        %903 = vmatpush1.msra.mxu0 %v473
        %904 = vmatprep.subr.mxu0 0.0
        %905 = vmatpush1.msra.mxu0 %v472
        %906 = vmatprep.subr.mxu0 0.0
        %907 = vmatpush1.msra.mxu0 %v471
        %908 = vmatprep.subr.mxu0 0.0
        %909 = vmatpush1.msra.mxu0 %v470
        %910 = vmatprep.subr.mxu0 0.0
        %911 = vmatpush1.msra.mxu0 %v469
        %912 = vmatprep.subr.mxu0 0.0
        %913 = vmatpush1.msra.mxu0 %v468
        %914 = vmatprep.subr.mxu0 0.0
        %915 = vmatpush2.msra.mxu0 0.0
        %916 = vmatprep.subr.mxu0 0.0
        %917 = vmatpush2.msra.mxu0 0.0
        %918 = vmatprep.subr.mxu0 0.0
        %919 = vmatpush2.msra.mxu0 0.0
        %920 = vmatprep.subr.mxu0 0.0
        %921 = vmatpush2.msra.mxu0 0.0
        %922 = vmatprep.subr.mxu0 0.0
        %923 = vmatpush2.msra.mxu0 0.0
        %924 = vmatprep.subr.mxu0 0.0
        %925 = vmatpush2.msra.mxu0 0.0
        %926 = vmatprep.subr.mxu0 0.0
        %927 = vmatpush2.msra.mxu0 0.0
        %928 = vmatprep.subr.mxu0 0.0
        %929 = vmatpush2.msra.mxu0 0.0
        %930 = vmatprep.subr.mxu0 0.0
        %931 = vmatpush2.msra.mxu0 0.0
        %932 = vmatprep.subr.mxu0 0.0
        %933 = vmatpush2.msra.mxu0 0.0
        %934 = vmatprep.subr.mxu0 0.0
        %935 = vmatpush2.msra.mxu0 0.0
        %936 = vmatprep.subr.mxu0 0.0
        %937 = vmatpush2.msra.mxu0 0.0
        %938 = vmatprep.subr.mxu0 0.0
        %939 = vmatpush2.msra.mxu0 0.0
        %940 = vmatprep.subr.mxu0 0.0
        %941 = vmatpush2.msra.mxu0 0.0
        %942 = vmatprep.subr.mxu0 0.0
        %943 = vmatpush2.msra.mxu0 0.0
        %944 = vmatprep.subr.mxu0 0.0
        %945 = vmatpush2.msra.mxu0 0.0
        %946 = vmatprep.mubr.f32.mxu0 0.0
        %947 = vmatmul.mubr.f32.gmra.mxu0 %v875
        %v948 = vpop.f32.mrf.mxu0
        %v949 = vadd.f32 0.0, %v948
        %v950 = vpop.f32.mrf.mxu0
        %951 = vdwg.mxu0
        %v952 = vadd.f32 %v881, %v949
        %v953 = vtanh.pop %v952
        %v954 = vld [vmem:[#allocation3 + $0x6] sm:$0x1]
        %v955 = vld [vmem:[%s466 + $0x6] sm:$0x1]
        %v957 = vrot.slane %v955, 7
        %v959 = vsel %vm490, %v954, %v957
        %960 = vmatprep.subr.mxu0 0.0
        %961 = vmatpush1.msra.mxu0 %v483
        %962 = vmatprep.subr.mxu0 0.0
        %963 = vmatpush1.msra.mxu0 %v482
        %964 = vmatprep.subr.mxu0 0.0
        %965 = vmatpush1.msra.mxu0 %v481
        %966 = vmatprep.subr.mxu0 0.0
        %967 = vmatpush1.msra.mxu0 %v480
        %968 = vmatprep.subr.mxu0 0.0
        %969 = vmatpush1.msra.mxu0 %v479
        %970 = vmatprep.subr.mxu0 0.0
        %971 = vmatpush1.msra.mxu0 %v478
        %972 = vmatprep.subr.mxu0 0.0
        %973 = vmatpush1.msra.mxu0 %v477
        %974 = vmatprep.subr.mxu0 0.0
        %975 = vmatpush1.msra.mxu0 %v476
        %976 = vmatprep.subr.mxu0 0.0
        %977 = vmatpush1.msra.mxu0 %v475
        %978 = vmatprep.subr.mxu0 0.0
        %979 = vmatpush1.msra.mxu0 %v474
        %980 = vmatprep.subr.mxu0 0.0
        %981 = vmatpush1.msra.mxu0 %v473
        %982 = vmatprep.subr.mxu0 0.0
        %983 = vmatpush1.msra.mxu0 %v472
        %984 = vmatprep.subr.mxu0 0.0
        %985 = vmatpush1.msra.mxu0 %v471
        %986 = vmatprep.subr.mxu0 0.0
        %987 = vmatpush1.msra.mxu0 %v470
        %988 = vmatprep.subr.mxu0 0.0
        %989 = vmatpush1.msra.mxu0 %v469
        %990 = vmatprep.subr.mxu0 0.0
        %991 = vmatpush1.msra.mxu0 %v468
        %992 = vmatprep.subr.mxu0 0.0
        %993 = vmatpush2.msra.mxu0 0.0
        %994 = vmatprep.subr.mxu0 0.0
        %995 = vmatpush2.msra.mxu0 0.0
        %996 = vmatprep.subr.mxu0 0.0
        %997 = vmatpush2.msra.mxu0 0.0
        %998 = vmatprep.subr.mxu0 0.0
        %999 = vmatpush2.msra.mxu0 0.0
        %1000 = vmatprep.subr.mxu0 0.0
        %1001 = vmatpush2.msra.mxu0 0.0
        %1002 = vmatprep.subr.mxu0 0.0
        %1003 = vmatpush2.msra.mxu0 0.0
        %1004 = vmatprep.subr.mxu0 0.0
        %1005 = vmatpush2.msra.mxu0 0.0
        %1006 = vmatprep.subr.mxu0 0.0
        %1007 = vmatpush2.msra.mxu0 0.0
        %1008 = vmatprep.subr.mxu0 0.0
        %1009 = vmatpush2.msra.mxu0 0.0
        %1010 = vmatprep.subr.mxu0 0.0
        %1011 = vmatpush2.msra.mxu0 0.0
        %1012 = vmatprep.subr.mxu0 0.0
        %1013 = vmatpush2.msra.mxu0 0.0
        %1014 = vmatprep.subr.mxu0 0.0
        %1015 = vmatpush2.msra.mxu0 0.0
        %1016 = vmatprep.subr.mxu0 0.0
        %1017 = vmatpush2.msra.mxu0 0.0
        %1018 = vmatprep.subr.mxu0 0.0
        %1019 = vmatpush2.msra.mxu0 0.0
        %1020 = vmatprep.subr.mxu0 0.0
        %1021 = vmatpush2.msra.mxu0 0.0
        %1022 = vmatprep.subr.mxu0 0.0
        %1023 = vmatpush2.msra.mxu0 0.0
        %1024 = vmatprep.mubr.f32.mxu0 0.0
        %1025 = vmatmul.mubr.f32.gmra.mxu0 %v953
        %v1026 = vpop.f32.mrf.mxu0
        %v1027 = vadd.f32 0.0, %v1026
        %v1028 = vpop.f32.mrf.mxu0
        %1029 = vdwg.mxu0
        %v1030 = vadd.f32 %v959, %v1027
        %v1031 = vtanh.pop %v1030
        %v1032 = vld [vmem:[#allocation3 + $0x7] sm:$0x1]
        %v1033 = vld [vmem:[%s466 + $0x7] sm:$0x1]
        %v1035 = vrot.slane %v1033, 7
        %v1037 = vsel %vm490, %v1032, %v1035
        %1038 = vmatprep.subr.mxu0 0.0
        %1039 = vmatpush1.msra.mxu0 %v483
        %1040 = vmatprep.subr.mxu0 0.0
        %1041 = vmatpush1.msra.mxu0 %v482
        %1042 = vmatprep.subr.mxu0 0.0
        %1043 = vmatpush1.msra.mxu0 %v481
        %1044 = vmatprep.subr.mxu0 0.0
        %1045 = vmatpush1.msra.mxu0 %v480
        %1046 = vmatprep.subr.mxu0 0.0
        %1047 = vmatpush1.msra.mxu0 %v479
        %1048 = vmatprep.subr.mxu0 0.0
        %1049 = vmatpush1.msra.mxu0 %v478
        %1050 = vmatprep.subr.mxu0 0.0
        %1051 = vmatpush1.msra.mxu0 %v477
        %1052 = vmatprep.subr.mxu0 0.0
        %1053 = vmatpush1.msra.mxu0 %v476
        %1054 = vmatprep.subr.mxu0 0.0
        %1055 = vmatpush1.msra.mxu0 %v475
        %1056 = vmatprep.subr.mxu0 0.0
        %1057 = vmatpush1.msra.mxu0 %v474
        %1058 = vmatprep.subr.mxu0 0.0
        %1059 = vmatpush1.msra.mxu0 %v473
        %1060 = vmatprep.subr.mxu0 0.0
        %1061 = vmatpush1.msra.mxu0 %v472
        %1062 = vmatprep.subr.mxu0 0.0
        %1063 = vmatpush1.msra.mxu0 %v471
        %1064 = vmatprep.subr.mxu0 0.0
        %1065 = vmatpush1.msra.mxu0 %v470
        %1066 = vmatprep.subr.mxu0 0.0
        %1067 = vmatpush1.msra.mxu0 %v469
        %1068 = vmatprep.subr.mxu0 0.0
        %1069 = vmatpush1.msra.mxu0 %v468
        %1070 = vmatprep.subr.mxu0 0.0
        %1071 = vmatpush2.msra.mxu0 0.0
        %1072 = vmatprep.subr.mxu0 0.0
        %1073 = vmatpush2.msra.mxu0 0.0
        %1074 = vmatprep.subr.mxu0 0.0
        %1075 = vmatpush2.msra.mxu0 0.0
        %1076 = vmatprep.subr.mxu0 0.0
        %1077 = vmatpush2.msra.mxu0 0.0
        %1078 = vmatprep.subr.mxu0 0.0
        %1079 = vmatpush2.msra.mxu0 0.0
        %1080 = vmatprep.subr.mxu0 0.0
        %1081 = vmatpush2.msra.mxu0 0.0
        %1082 = vmatprep.subr.mxu0 0.0
        %1083 = vmatpush2.msra.mxu0 0.0
        %1084 = vmatprep.subr.mxu0 0.0
        %1085 = vmatpush2.msra.mxu0 0.0
        %1086 = vmatprep.subr.mxu0 0.0
        %1087 = vmatpush2.msra.mxu0 0.0
        %1088 = vmatprep.subr.mxu0 0.0
        %1089 = vmatpush2.msra.mxu0 0.0
        %1090 = vmatprep.subr.mxu0 0.0
        %1091 = vmatpush2.msra.mxu0 0.0
        %1092 = vmatprep.subr.mxu0 0.0
        %1093 = vmatpush2.msra.mxu0 0.0
        %1094 = vmatprep.subr.mxu0 0.0
        %1095 = vmatpush2.msra.mxu0 0.0
        %1096 = vmatprep.subr.mxu0 0.0
        %1097 = vmatpush2.msra.mxu0 0.0
        %1098 = vmatprep.subr.mxu0 0.0
        %1099 = vmatpush2.msra.mxu0 0.0
        %1100 = vmatprep.subr.mxu0 0.0
        %1101 = vmatpush2.msra.mxu0 0.0
        %1102 = vmatprep.mubr.f32.mxu0 0.0
        %1103 = vmatmul.mubr.f32.gmra.mxu0 %v1031
        %v1104 = vpop.f32.mrf.mxu0
        %v1105 = vadd.f32 0.0, %v1104
        %v1106 = vpop.f32.mrf.mxu0
        %1107 = vdwg.mxu0
        %v1108 = vadd.f32 %v1037, %v1105
        %v1109 = vtanh.pop %v1108
        %1110 = vst [vmem:[#allocation2] sm:$0x3] %v1109
        %p1111 = scmp.eq.s32.totalorder %s23, 1
        // Predicated region
        $region65: #{tpu_custom_call.1} parent=43 // pred_check
          %p1112 = pneg %p1111
        $region66: #{tpu_custom_call.1} parent=43 // pred_check_branch
          %1114 = sbr.rel (%p1112) target = $region68
        $region67: #{tpu_custom_call.1} parent=43 // pred_region
          %v1115 = vld [vmem:[#allocation2] sm:$0x3]
          %v1116 = vld [vmem:[#allocation10] sm:$0xff]
          %v1117 = vld [vmem:[#allocation10 + $0x8] sm:$0xff]
          %v1118 = vld [vmem:[#allocation10 + $0x10] sm:$0xff]
          %v1119 = vld [vmem:[#allocation10 + $0x18] sm:$0xff]
          %v1120 = vld [vmem:[#allocation10 + $0x20] sm:$0xff]
          %v1121 = vld [vmem:[#allocation10 + $0x28] sm:$0xff]
          %v1122 = vld [vmem:[#allocation10 + $0x30] sm:$0xff]
          %v1123 = vld [vmem:[#allocation10 + $0x38] sm:$0xff]
          %v1124 = vld [vmem:[#allocation10 + $0x40] sm:$0xff]
          %v1125 = vld [vmem:[#allocation10 + $0x48] sm:$0xff]
          %v1126 = vld [vmem:[#allocation10 + $0x50] sm:$0xff]
          %v1127 = vld [vmem:[#allocation10 + $0x58] sm:$0xff]
          %v1128 = vld [vmem:[#allocation10 + $0x60] sm:$0xff]
          %v1129 = vld [vmem:[#allocation10 + $0x68] sm:$0xff]
          %v1130 = vld [vmem:[#allocation10 + $0x70] sm:$0xff]
          %v1131 = vld [vmem:[#allocation10 + $0x78] sm:$0xff]
          %v1132 = vld [vmem:[%s5] sm:$0x1]
          %v1134 = vlaneseq
          %v1135 = vshrl.u32 %v1134, 7
          %v1136 = vsub.s32 0, %v1135
          %v1137 = vrot.slane %v1132, %v1136
          %1139 = vmatprep.subr.mxu0 0.0
          %1140 = vmatpush1.msra.mxu0 %v1131
          %1141 = vmatprep.subr.mxu0 0.0
          %1142 = vmatpush1.msra.mxu0 %v1130
          %1143 = vmatprep.subr.mxu0 0.0
          %1144 = vmatpush1.msra.mxu0 %v1129
          %1145 = vmatprep.subr.mxu0 0.0
          %1146 = vmatpush1.msra.mxu0 %v1128
          %1147 = vmatprep.subr.mxu0 0.0
          %1148 = vmatpush1.msra.mxu0 %v1127
          %1149 = vmatprep.subr.mxu0 0.0
          %1150 = vmatpush1.msra.mxu0 %v1126
          %1151 = vmatprep.subr.mxu0 0.0
          %1152 = vmatpush1.msra.mxu0 %v1125
          %1153 = vmatprep.subr.mxu0 0.0
          %1154 = vmatpush1.msra.mxu0 %v1124
          %1155 = vmatprep.subr.mxu0 0.0
          %1156 = vmatpush1.msra.mxu0 %v1123
          %1157 = vmatprep.subr.mxu0 0.0
          %1158 = vmatpush1.msra.mxu0 %v1122
          %1159 = vmatprep.subr.mxu0 0.0
          %1160 = vmatpush1.msra.mxu0 %v1121
          %1161 = vmatprep.subr.mxu0 0.0
          %1162 = vmatpush1.msra.mxu0 %v1120
          %1163 = vmatprep.subr.mxu0 0.0
          %1164 = vmatpush1.msra.mxu0 %v1119
          %1165 = vmatprep.subr.mxu0 0.0
          %1166 = vmatpush1.msra.mxu0 %v1118
          %1167 = vmatprep.subr.mxu0 0.0
          %1168 = vmatpush1.msra.mxu0 %v1117
          %1169 = vmatprep.subr.mxu0 0.0
          %1170 = vmatpush1.msra.mxu0 %v1116
          %1171 = vmatprep.subr.mxu0 0.0
          %1172 = vmatpush2.msra.mxu0 0.0
          %1173 = vmatprep.subr.mxu0 0.0
          %1174 = vmatpush2.msra.mxu0 0.0
          %1175 = vmatprep.subr.mxu0 0.0
          %1176 = vmatpush2.msra.mxu0 0.0
          %1177 = vmatprep.subr.mxu0 0.0
          %1178 = vmatpush2.msra.mxu0 0.0
          %1179 = vmatprep.subr.mxu0 0.0
          %1180 = vmatpush2.msra.mxu0 0.0
          %1181 = vmatprep.subr.mxu0 0.0
          %1182 = vmatpush2.msra.mxu0 0.0
          %1183 = vmatprep.subr.mxu0 0.0
          %1184 = vmatpush2.msra.mxu0 0.0
          %1185 = vmatprep.subr.mxu0 0.0
          %1186 = vmatpush2.msra.mxu0 0.0
          %1187 = vmatprep.subr.mxu0 0.0
          %1188 = vmatpush2.msra.mxu0 0.0
          %1189 = vmatprep.subr.mxu0 0.0
          %1190 = vmatpush2.msra.mxu0 0.0
          %1191 = vmatprep.subr.mxu0 0.0
          %1192 = vmatpush2.msra.mxu0 0.0
          %1193 = vmatprep.subr.mxu0 0.0
          %1194 = vmatpush2.msra.mxu0 0.0
          %1195 = vmatprep.subr.mxu0 0.0
          %1196 = vmatpush2.msra.mxu0 0.0
          %1197 = vmatprep.subr.mxu0 0.0
          %1198 = vmatpush2.msra.mxu0 0.0
          %1199 = vmatprep.subr.mxu0 0.0
          %1200 = vmatpush2.msra.mxu0 0.0
          %1201 = vmatprep.subr.mxu0 0.0
          %1202 = vmatpush2.msra.mxu0 0.0
          %1203 = vmatprep.mubr.f32.mxu0 0.0
          %1204 = vmatmul.mubr.f32.gmra.mxu0 %v1115
          %v1205 = vpop.f32.mrf.mxu0
          %v1206 = vadd.f32 %v1137, %v1205
          %v1207 = vpop.f32.mrf.mxu0
          %1208 = vdwg.mxu0
          %1209 = vst [vmem:[#allocation12] sm:$0x3] %v1206
        $region68: #{tpu_custom_call.1} parent=43 // pred_fallthru
          _
        // Predicated region
        $region69: #{tpu_custom_call.1} parent=43 // pred_check
          %p1210 = pneg %p167
        $region70: #{tpu_custom_call.1} parent=43 // pred_check_branch
          %1212 = sbr.rel (%p1210) target = $region72
        $region71: #{tpu_custom_call.1} parent=43 // pred_region
          %s1214 = ssub.s32 32, 32
          %1215 = vsyncadd [#allocation6], %s1214
          %s1217 = sshll.u32 [#allocation12], 4
          %s1218 = int_to_ptr.vmem [resolvable:$true] %s1217
          %1220 = dma.vmem_to_hbm [thread:$0]  %s1218, 32, %s6, [#allocation6]
        $region72: #{tpu_custom_call.1} parent=43 // pred_fallthru
          _
        // Predicated region
        $region73: #{tpu_custom_call.1} parent=43 // pred_check
          %p1221 = pneg %p167
        $region74: #{tpu_custom_call.1} parent=43 // pred_check_branch
          %1223 = sbr.rel (%p1221) target = $region76
        $region75: #{tpu_custom_call.1} parent=43 // pred_region
          %1224 = dma.done [#allocation6], 32
        $region76: #{tpu_custom_call.1} parent=43 // pred_fallthru
          _
      $region44: #{tpu_custom_call.1} parent=5 // pred_fallthru
        _
      %p1225 = scmp.le.s32.totalorder 2, %s18
      // Predicated region
      $region77: #{tpu_custom_call.1} parent=5 // pred_check
        %p1226 = pneg %p1225
      $region78: #{tpu_custom_call.1} parent=5 // pred_check_branch
        %1228 = sbr.rel (%p1226) target = $region80
      $region79: #{tpu_custom_call.1} parent=5 // pred_region
        %s1229 = ssub.s32 %s18, 2
      $region80: #{tpu_custom_call.1} parent=5 // pred_fallthru
        _
    $region6: #{tpu_custom_call.1} parent=1 // loop_footer
      %s22 = sadd.s32 1, %s18
    $region7: #{tpu_custom_call.1} parent=1 // loop_footer_branch
      %17 = sbr.rel target = $region3
    $region8: #{tpu_custom_call.1} parent=1 // loop_exit
      _
    %1230 = vsyncpa [#allocation5], 1
    %s1231 = scalar_lea.sflag [#allocation5], 1
    %1232 = vsyncpa %s1231, 1
    %1233 = vsyncpa [#allocation8], 1
    %1234 = vsyncpa [#allocation11], 1
    %1235 = vsyncpa [#allocation6], 1
    %s1236 = scalar_lea.sflag [#allocation6], 1
    %1237 = vsyncpa %s1236, 1

</llo_original>
